<compile_context>
chip_gen: v7x
topology: tpu7x:2x2x1
jax: 0.10.0
libtpu: 0.0.40
codegen_flags: <defaults>
</compile_context>

<pallas_src>
import jax
import jax.numpy as jnp
from jax.experimental import pallas as pl
from jax.experimental.pallas import tpu as pltpu

# ------------------------- config (small, synthetic) -------------------------
B = 2           # batch
S = 16          # sequence length (num patches)
D = 32          # hidden_size
H = 4           # num_attention_heads
HD = D // H     # head_dim
I = 64          # intermediate_size
EPS = 1e-6      # layer_norm_eps
SCALE = HD ** (-0.5)

MXU_DTYPE = jnp.bfloat16   # matmul operand dtype (f32 accumulation everywhere)


def _layernorm(x, gamma, beta, eps):
    # x: (N, D) f32; gamma/beta: (1, D) f32
    mean = jnp.mean(x, axis=-1, keepdims=True)
    var = jnp.mean((x - mean) ** 2, axis=-1, keepdims=True)
    return (x - mean) * jax.lax.rsqrt(var + eps) * gamma + beta


def _gelu_tanh(x):
    # matches F.gelu(x, approximate='tanh')
    c = jnp.sqrt(2.0 / jnp.pi).astype(x.dtype)
    return 0.5 * x * (1.0 + jnp.tanh(c * (x + 0.044715 * x * x * x)))


def encoder_layer_kernel(
    x_ref,
    ln1g_ref, ln1b_ref,
    wqkv_ref, bqkv_ref, wo_ref, bo_ref,
    ln2g_ref, ln2b_ref,
    w1_ref, b1_ref, w2_ref, b2_ref,
    o_ref,
    attn_scr,
):
    # One grid step == one batch element.
    x = x_ref[0]                                             # (S, D) f32

    # ---------------- LayerNorm 1 (f32) ----------------
    h = _layernorm(x, ln1g_ref[...], ln1b_ref[...], EPS)
    h16 = h.astype(MXU_DTYPE)                                # (S, D) bf16

    # ---------------- attention: per-head, head-major weights ----------------
    # wqkv_ref: (3, H, D, HD) bf16 (q pre-scaled); bqkv_ref: (3, H, 1, HD) f32.
    # Leading-axis indexing of the weight refs is free (no lane slicing).
    # TODO(synk): switch to lax.fori_loop over heads at H=16 (live ranges).
    for hh in range(H):
        q = jnp.dot(h16, wqkv_ref[0, hh],
                    preferred_element_type=jnp.float32) + bqkv_ref[0, hh]   # (S, HD)
        k = jnp.dot(h16, wqkv_ref[1, hh],
                    preferred_element_type=jnp.float32) + bqkv_ref[1, hh]   # (S, HD)
        v = jnp.dot(h16, wqkv_ref[2, hh],
                    preferred_element_type=jnp.float32) + bqkv_ref[2, hh]   # (S, HD)

        # q @ k^T without an explicit transpose: contract last dims
        # (SCALE already folded into q's weights/bias wrapper-side).
        s = jax.lax.dot_general(
            q.astype(MXU_DTYPE), k.astype(MXU_DTYPE),
            (((1,), (1,)), ((), ())),
            preferred_element_type=jnp.float32)              # (S, S) f32
        s = s - jnp.max(s, axis=-1, keepdims=True)
        p = jnp.exp(s)
        p = p * pl.reciprocal(jnp.sum(p, axis=-1, keepdims=True), approx=True)

        head_out = jnp.dot(p.astype(MXU_DTYPE), v.astype(MXU_DTYPE),
                           preferred_element_type=jnp.float32)              # (S, HD)
        # Disjoint lane-slice writes into the (S, D) assembly scratch: no
        # serial accumulation chain, and the out-proj below runs once at
        # full contraction depth K = D.
        attn_scr[:, hh * HD:(hh + 1) * HD] = head_out

    # ---------------- single full-depth output projection + residual --------
    attn = jnp.dot(attn_scr[...].astype(MXU_DTYPE), wo_ref[...],
                   preferred_element_type=jnp.float32)       # (S, D) f32
    x1 = x + attn + bo_ref[...]                              # residual in registers

    # ---------------- LayerNorm 2 + MLP ----------------
    # TODO(synk): tile I as a trailing "arbitrary" K axis at real I=4304.
    h2 = _layernorm(x1, ln2g_ref[...], ln2b_ref[...], EPS)
    m = jnp.dot(h2.astype(MXU_DTYPE), w1_ref[...],
                preferred_element_type=jnp.float32) + b1_ref[...]           # (S, I)
    m = _gelu_tanh(m)
    m = jnp.dot(m.astype(MXU_DTYPE), w2_ref[...],
                preferred_element_type=jnp.float32) + b2_ref[...]           # (S, D)

    o_ref[0] = x1 + m


def _head_major_w(w):
    # (D, D) (in, out) -> (H, D, HD): column block of head hh -> leading index hh
    return w.reshape(D, H, HD).transpose(1, 0, 2)


def _head_major_b(b):
    # (1, D) -> (H, 1, HD)
    return b.reshape(H, 1, HD)


def siglip_encoder_layer(x, params):
    """x: (B, S, D) float32; params: dict of 2-D float32 arrays (weights (in, out))."""
    # Head-major fused QKV weights; attention scale folded into q (wrapper-side, free).
    wqkv = jnp.stack([_head_major_w(params["wq"] * SCALE),
                      _head_major_w(params["wk"]),
                      _head_major_w(params["wv"])], axis=0).astype(MXU_DTYPE)  # (3,H,D,HD)
    bqkv = jnp.stack([_head_major_b(params["bq"] * SCALE),
                      _head_major_b(params["bk"]),
                      _head_major_b(params["bv"])], axis=0)                    # (3,H,1,HD) f32

    weights = [
        params["ln1g"], params["ln1b"],
        wqkv, bqkv,
        params["wo"].astype(MXU_DTYPE), params["bo"],
        params["ln2g"], params["ln2b"],
        params["w1"].astype(MXU_DTYPE), params["b1"],
        params["w2"].astype(MXU_DTYPE), params["b2"],
    ]

    out = pl.pallas_call(
        encoder_layer_kernel,
        out_shape=jax.ShapeDtypeStruct((B, S, D), jnp.float32),
        grid=(B,),
        in_specs=[pl.BlockSpec((1, S, D), lambda b: (b, 0, 0))]
        + [pl.BlockSpec(memory_space=pltpu.MemorySpace.VMEM) for _ in weights],
        out_specs=pl.BlockSpec((1, S, D), lambda b: (b, 0, 0)),
        scratch_shapes=[pltpu.VMEM((S, D), jnp.float32)],
        compiler_params=pltpu.CompilerParams(
            dimension_semantics=("parallel",),
            vmem_limit_bytes=32 * 1024 * 1024),
    )(x, *weights)
    return out


# ------------------------- pure-JAX reference -------------------------
def reference(x, p, mm_dtype=jnp.float32):
    """mm_dtype=float32: exact module semantics.
       mm_dtype=bfloat16: mirrors the kernel's bf16 matmul operands."""
    def mm(a, b):
        return jnp.dot(a.astype(mm_dtype), b.astype(mm_dtype),
                       preferred_element_type=jnp.float32)

    def ln(z, g, bta):
        mean = jnp.mean(z, axis=-1, keepdims=True)
        var = jnp.mean((z - mean) ** 2, axis=-1, keepdims=True)
        return (z - mean) * jax.lax.rsqrt(var + EPS) * g + bta

    h = ln(x, p["ln1g"], p["ln1b"])
    q = mm(h, p["wq"]) + p["bq"]
    k = mm(h, p["wk"]) + p["bk"]
    v = mm(h, p["wv"]) + p["bv"]
    qh = q.reshape(B, S, H, HD).transpose(0, 2, 1, 3).astype(mm_dtype)
    kh = k.reshape(B, S, H, HD).transpose(0, 2, 1, 3).astype(mm_dtype)
    vh = v.reshape(B, S, H, HD).transpose(0, 2, 1, 3).astype(mm_dtype)
    att = jnp.einsum("bhqd,bhkd->bhqk", qh, kh,
                     preferred_element_type=jnp.float32) * SCALE
    att = jax.nn.softmax(att, axis=-1)
    out = jnp.einsum("bhqk,bhkd->bhqd", att.astype(mm_dtype), vh,
                     preferred_element_type=jnp.float32)
    out = out.transpose(0, 2, 1, 3).reshape(B, S, D)
    out = mm(out, p["wo"]) + p["bo"]
    x1 = x + out
    h2 = ln(x1, p["ln2g"], p["ln2b"])
    m = mm(h2, p["w1"]) + p["b1"]
    m = _gelu_tanh(m)
    m = mm(m, p["w2"]) + p["b2"]
    return x1 + m


def make_params(key):
    ks = jax.random.split(key, 12)
    scale = 0.05
    return {
        "ln1g": jnp.ones((1, D), jnp.float32),
        "ln1b": jnp.zeros((1, D), jnp.float32),
        "ln2g": jnp.ones((1, D), jnp.float32),
        "ln2b": jnp.zeros((1, D), jnp.float32),
        # nn.Linear weights are (out, in) in torch; stored pre-transposed (in, out)
        "wq": scale * jax.random.normal(ks[0], (D, D), jnp.float32),
        "bq": scale * jax.random.normal(ks[1], (1, D), jnp.float32),
        "wk": scale * jax.random.normal(ks[2], (D, D), jnp.float32),
        "bk": scale * jax.random.normal(ks[3], (1, D), jnp.float32),
        "wv": scale * jax.random.normal(ks[4], (D, D), jnp.float32),
        "bv": scale * jax.random.normal(ks[5], (1, D), jnp.float32),
        "wo": scale * jax.random.normal(ks[6], (D, D), jnp.float32),
        "bo": scale * jax.random.normal(ks[7], (1, D), jnp.float32),
        "w1": scale * jax.random.normal(ks[8], (D, I), jnp.float32),
        "b1": scale * jax.random.normal(ks[9], (1, I), jnp.float32),
        "w2": scale * jax.random.normal(ks[10], (I, D), jnp.float32),
        "b2": scale * jax.random.normal(ks[11], (1, D), jnp.float32),
    }


if __name__ == "__main__":
    key = jax.random.PRNGKey(0)
    kx, kp = jax.random.split(key)
    x = jax.random.normal(kx, (B, S, D), jnp.float32)
    params = make_params(kp)

    out = jax.block_until_ready(siglip_encoder_layer(x, params))
    assert out.shape == (B, S, D)

    # Main check: against a reference that mirrors the kernel's bf16 matmul
    # operands (tolerance covers the approx-reciprocal softmax denominator and
    # the wrapper-side SCALE fold into the bf16 q weights).
    ref_bf16 = reference(x, params, mm_dtype=jnp.bfloat16)
    err_bf16 = float(jnp.max(jnp.abs(out - ref_bf16)))
    assert err_bf16 < 3e-3, err_bf16

    # Sanity check: still close to exact f32 module semantics (bf16 rounding).
    ref_f32 = reference(x, params, mm_dtype=jnp.float32)
    err_f32 = float(jnp.max(jnp.abs(out - ref_f32)))
    assert err_f32 < 5e-2, err_f32

    print("KERNEL_OK")
</pallas_src>

<mosaic_0001>
module attributes {stable_mosaic.version = 11 : i64} {
  func.func @encoder_layer_kernel(%arg0: i32, %arg1: memref<1x16x32xf32, #tpu.memory_space<vmem>>, %arg2: memref<1x32xf32, #tpu.memory_space<vmem>>, %arg3: memref<1x32xf32, #tpu.memory_space<vmem>>, %arg4: memref<3x4x32x8xbf16, #tpu.memory_space<vmem>>, %arg5: memref<3x4x1x8xf32, #tpu.memory_space<vmem>>, %arg6: memref<32x32xbf16, #tpu.memory_space<vmem>>, %arg7: memref<1x32xf32, #tpu.memory_space<vmem>>, %arg8: memref<1x32xf32, #tpu.memory_space<vmem>>, %arg9: memref<1x32xf32, #tpu.memory_space<vmem>>, %arg10: memref<32x64xbf16, #tpu.memory_space<vmem>>, %arg11: memref<1x64xf32, #tpu.memory_space<vmem>>, %arg12: memref<64x32xbf16, #tpu.memory_space<vmem>>, %arg13: memref<1x32xf32, #tpu.memory_space<vmem>>, %arg14: memref<1x16x32xf32, #tpu.memory_space<vmem>>, %arg15: memref<16x32xf32, #tpu.memory_space<vmem>>) attributes {dimension_semantics = [#tpu.dimension_semantics<parallel>], iteration_bounds = array<i64: 2>, scalar_prefetch = 0 : i64, scratch_operands = 1 : i64, tpu.core_type = #tpu.core_type<tc>, window_params = [{transform_indices = @transform_0, window_bounds = array<i64: 1, 16, 32>}, {pipeline_mode = #tpu.pipeline_mode<synchronous>, transform_indices = @transform_1, window_bounds = array<i64: 1, 32>}, {pipeline_mode = #tpu.pipeline_mode<synchronous>, transform_indices = @transform_2, window_bounds = array<i64: 1, 32>}, {pipeline_mode = #tpu.pipeline_mode<synchronous>, transform_indices = @transform_3, window_bounds = array<i64: 3, 4, 32, 8>}, {pipeline_mode = #tpu.pipeline_mode<synchronous>, transform_indices = @transform_4, window_bounds = array<i64: 3, 4, 1, 8>}, {pipeline_mode = #tpu.pipeline_mode<synchronous>, transform_indices = @transform_5, window_bounds = array<i64: 32, 32>}, {pipeline_mode = #tpu.pipeline_mode<synchronous>, transform_indices = @transform_6, window_bounds = array<i64: 1, 32>}, {pipeline_mode = #tpu.pipeline_mode<synchronous>, transform_indices = @transform_7, window_bounds = array<i64: 1, 32>}, {pipeline_mode = #tpu.pipeline_mode<synchronous>, transform_indices = @transform_8, window_bounds = array<i64: 1, 32>}, {pipeline_mode = #tpu.pipeline_mode<synchronous>, transform_indices = @transform_9, window_bounds = array<i64: 32, 64>}, {pipeline_mode = #tpu.pipeline_mode<synchronous>, transform_indices = @transform_10, window_bounds = array<i64: 1, 64>}, {pipeline_mode = #tpu.pipeline_mode<synchronous>, transform_indices = @transform_11, window_bounds = array<i64: 64, 32>}, {pipeline_mode = #tpu.pipeline_mode<synchronous>, transform_indices = @transform_12, window_bounds = array<i64: 1, 32>}, {transform_indices = @transform_13, window_bounds = array<i64: 1, 16, 32>}]} {
    %c0 = arith.constant 0 : index
    %c0_0 = arith.constant 0 : index
    %c0_1 = arith.constant 0 : index
    %0 = vector.load %arg1[%c0, %c0_0, %c0_1] : memref<1x16x32xf32, #tpu.memory_space<vmem>>, vector<1x16x32xf32>
    %1 = vector.shape_cast %0 : vector<1x16x32xf32> to vector<16x32xf32>
    %c0_2 = arith.constant 0 : index
    %c0_3 = arith.constant 0 : index
    %2 = vector.load %arg2[%c0_2, %c0_3] : memref<1x32xf32, #tpu.memory_space<vmem>>, vector<1x32xf32>
    %c0_4 = arith.constant 0 : index
    %c0_5 = arith.constant 0 : index
    %3 = vector.load %arg3[%c0_4, %c0_5] : memref<1x32xf32, #tpu.memory_space<vmem>>, vector<1x32xf32>
    %cst = arith.constant dense<0.000000e+00> : vector<16xf32>
    %4 = vector.multi_reduction <add>, %1, %cst [1] : vector<16x32xf32> to vector<16xf32>
    %5 = vector.shape_cast %4 : vector<16xf32> to vector<16x1xf32>
    %cst_6 = arith.constant 3.200000e+01 : f32
    %6 = vector.broadcast %cst_6 : f32 to vector<16x1xf32>
    %7 = arith.divf %5, %6 : vector<16x1xf32>
    %8 = vector.broadcast %7 : vector<16x1xf32> to vector<16x32xf32>
    %9 = arith.subf %1, %8 : vector<16x32xf32>
    %10 = arith.mulf %9, %9 : vector<16x32xf32>
    %cst_7 = arith.constant dense<0.000000e+00> : vector<16xf32>
    %11 = vector.multi_reduction <add>, %10, %cst_7 [1] : vector<16x32xf32> to vector<16xf32>
    %12 = vector.shape_cast %11 : vector<16xf32> to vector<16x1xf32>
    %cst_8 = arith.constant 3.200000e+01 : f32
    %13 = vector.broadcast %cst_8 : f32 to vector<16x1xf32>
    %14 = arith.divf %12, %13 : vector<16x1xf32>
    %15 = vector.broadcast %7 : vector<16x1xf32> to vector<16x32xf32>
    %16 = arith.subf %1, %15 : vector<16x32xf32>
    %cst_9 = arith.constant 9.99999997E-7 : f32
    %17 = vector.broadcast %cst_9 : f32 to vector<16x1xf32>
    %18 = arith.addf %14, %17 : vector<16x1xf32>
    %19 = math.rsqrt %18 : vector<16x1xf32>
    %20 = vector.broadcast %19 : vector<16x1xf32> to vector<16x32xf32>
    %21 = arith.mulf %16, %20 : vector<16x32xf32>
    %22 = vector.broadcast %2 : vector<1x32xf32> to vector<16x32xf32>
    %23 = arith.mulf %21, %22 : vector<16x32xf32>
    %24 = vector.broadcast %3 : vector<1x32xf32> to vector<16x32xf32>
    %25 = arith.addf %23, %24 : vector<16x32xf32>
    %26 = arith.truncf %25 : vector<16x32xf32> to vector<16x32xbf16>
    %c0_10 = arith.constant 0 : index
    %c0_11 = arith.constant 0 : index
    %c0_12 = arith.constant 0 : index
    %c0_13 = arith.constant 0 : index
    %27 = vector.load %arg4[%c0_10, %c0_11, %c0_12, %c0_13] : memref<3x4x32x8xbf16, #tpu.memory_space<vmem>>, vector<1x1x32x8xbf16>
    %28 = vector.shape_cast %27 : vector<1x1x32x8xbf16> to vector<32x8xbf16>
    %cst_14 = arith.constant dense<0.000000e+00> : vector<16x8xf32>
    %29 = tpu.matmul %26, %28, %cst_14 {dimension_numbers = #tpu.dot_dimension_numbers<[1], [0], [0], [1], [0, 0, 1, 1], [], []>} : vector<16x32xbf16>, vector<32x8xbf16>, vector<16x8xf32> -> vector<16x8xf32>
    %c0_15 = arith.constant 0 : index
    %c0_16 = arith.constant 0 : index
    %c0_17 = arith.constant 0 : index
    %c0_18 = arith.constant 0 : index
    %30 = vector.load %arg5[%c0_15, %c0_16, %c0_17, %c0_18] : memref<3x4x1x8xf32, #tpu.memory_space<vmem>>, vector<1x1x1x8xf32>
    %31 = vector.shape_cast %30 : vector<1x1x1x8xf32> to vector<1x8xf32>
    %32 = vector.broadcast %31 : vector<1x8xf32> to vector<16x8xf32>
    %33 = arith.addf %29, %32 : vector<16x8xf32>
    %c1 = arith.constant 1 : index
    %c0_19 = arith.constant 0 : index
    %c0_20 = arith.constant 0 : index
    %c0_21 = arith.constant 0 : index
    %34 = vector.load %arg4[%c1, %c0_19, %c0_20, %c0_21] : memref<3x4x32x8xbf16, #tpu.memory_space<vmem>>, vector<1x1x32x8xbf16>
    %35 = vector.shape_cast %34 : vector<1x1x32x8xbf16> to vector<32x8xbf16>
    %cst_22 = arith.constant dense<0.000000e+00> : vector<16x8xf32>
    %36 = tpu.matmul %26, %35, %cst_22 {dimension_numbers = #tpu.dot_dimension_numbers<[1], [0], [0], [1], [0, 0, 1, 1], [], []>} : vector<16x32xbf16>, vector<32x8xbf16>, vector<16x8xf32> -> vector<16x8xf32>
    %c1_23 = arith.constant 1 : index
    %c0_24 = arith.constant 0 : index
    %c0_25 = arith.constant 0 : index
    %c0_26 = arith.constant 0 : index
    %37 = vector.load %arg5[%c1_23, %c0_24, %c0_25, %c0_26] : memref<3x4x1x8xf32, #tpu.memory_space<vmem>>, vector<1x1x1x8xf32>
    %38 = vector.shape_cast %37 : vector<1x1x1x8xf32> to vector<1x8xf32>
    %39 = vector.broadcast %38 : vector<1x8xf32> to vector<16x8xf32>
    %40 = arith.addf %36, %39 : vector<16x8xf32>
    %c2 = arith.constant 2 : index
    %c0_27 = arith.constant 0 : index
    %c0_28 = arith.constant 0 : index
    %c0_29 = arith.constant 0 : index
    %41 = vector.load %arg4[%c2, %c0_27, %c0_28, %c0_29] : memref<3x4x32x8xbf16, #tpu.memory_space<vmem>>, vector<1x1x32x8xbf16>
    %42 = vector.shape_cast %41 : vector<1x1x32x8xbf16> to vector<32x8xbf16>
    %cst_30 = arith.constant dense<0.000000e+00> : vector<16x8xf32>
    %43 = tpu.matmul %26, %42, %cst_30 {dimension_numbers = #tpu.dot_dimension_numbers<[1], [0], [0], [1], [0, 0, 1, 1], [], []>} : vector<16x32xbf16>, vector<32x8xbf16>, vector<16x8xf32> -> vector<16x8xf32>
    %c2_31 = arith.constant 2 : index
    %c0_32 = arith.constant 0 : index
    %c0_33 = arith.constant 0 : index
    %c0_34 = arith.constant 0 : index
    %44 = vector.load %arg5[%c2_31, %c0_32, %c0_33, %c0_34] : memref<3x4x1x8xf32, #tpu.memory_space<vmem>>, vector<1x1x1x8xf32>
    %45 = vector.shape_cast %44 : vector<1x1x1x8xf32> to vector<1x8xf32>
    %46 = vector.broadcast %45 : vector<1x8xf32> to vector<16x8xf32>
    %47 = arith.addf %43, %46 : vector<16x8xf32>
    %48 = arith.truncf %33 : vector<16x8xf32> to vector<16x8xbf16>
    %49 = arith.truncf %40 : vector<16x8xf32> to vector<16x8xbf16>
    %cst_35 = arith.constant dense<0.000000e+00> : vector<16x16xf32>
    %50 = tpu.matmul %48, %49, %cst_35 {dimension_numbers = #tpu.dot_dimension_numbers<[1], [1], [0], [0], [0, 0, 1, 0], [], []>} : vector<16x8xbf16>, vector<16x8xbf16>, vector<16x16xf32> -> vector<16x16xf32>
    %cst_36 = arith.constant dense<0xFF800000> : vector<16xf32>
    %51 = vector.multi_reduction <maximumf>, %50, %cst_36 [1] : vector<16x16xf32> to vector<16xf32>
    %52 = vector.shape_cast %51 : vector<16xf32> to vector<16x1xf32>
    %53 = vector.broadcast %52 : vector<16x1xf32> to vector<16x16xf32>
    %54 = arith.subf %50, %53 : vector<16x16xf32>
    %55 = math.exp %54 : vector<16x16xf32>
    %cst_37 = arith.constant dense<0.000000e+00> : vector<16xf32>
    %56 = vector.multi_reduction <add>, %55, %cst_37 [1] : vector<16x16xf32> to vector<16xf32>
    %57 = vector.shape_cast %56 : vector<16xf32> to vector<16x1xf32>
    %58 = tpu.reciprocal %57 {approx = true} : vector<16x1xf32> -> vector<16x1xf32>
    %59 = vector.broadcast %58 : vector<16x1xf32> to vector<16x16xf32>
    %60 = arith.mulf %55, %59 : vector<16x16xf32>
    %61 = arith.truncf %60 : vector<16x16xf32> to vector<16x16xbf16>
    %62 = arith.truncf %47 : vector<16x8xf32> to vector<16x8xbf16>
    %cst_38 = arith.constant dense<0.000000e+00> : vector<16x8xf32>
    %63 = tpu.matmul %61, %62, %cst_38 {dimension_numbers = #tpu.dot_dimension_numbers<[1], [0], [0], [1], [0, 0, 1, 1], [], []>} : vector<16x16xbf16>, vector<16x8xbf16>, vector<16x8xf32> -> vector<16x8xf32>
    %c0_39 = arith.constant 0 : index
    %c0_40 = arith.constant 0 : index
    %64 = vector.load %arg15[%c0_39, %c0_40] : memref<16x32xf32, #tpu.memory_space<vmem>>, vector<16x8xf32>
    tpu.vector_store %arg15[%c0_39, %c0_40], %63 {strides = array<i32>} : memref<16x32xf32, #tpu.memory_space<vmem>>, vector<16x8xf32>,
    %c0_41 = arith.constant 0 : index
    %c1_42 = arith.constant 1 : index
    %c0_43 = arith.constant 0 : index
    %c0_44 = arith.constant 0 : index
    %65 = vector.load %arg4[%c0_41, %c1_42, %c0_43, %c0_44] : memref<3x4x32x8xbf16, #tpu.memory_space<vmem>>, vector<1x1x32x8xbf16>
    %66 = vector.shape_cast %65 : vector<1x1x32x8xbf16> to vector<32x8xbf16>
    %cst_45 = arith.constant dense<0.000000e+00> : vector<16x8xf32>
    %67 = tpu.matmul %26, %66, %cst_45 {dimension_numbers = #tpu.dot_dimension_numbers<[1], [0], [0], [1], [0, 0, 1, 1], [], []>} : vector<16x32xbf16>, vector<32x8xbf16>, vector<16x8xf32> -> vector<16x8xf32>
    %c0_46 = arith.constant 0 : index
    %c1_47 = arith.constant 1 : index
    %c0_48 = arith.constant 0 : index
    %c0_49 = arith.constant 0 : index
    %68 = vector.load %arg5[%c0_46, %c1_47, %c0_48, %c0_49] : memref<3x4x1x8xf32, #tpu.memory_space<vmem>>, vector<1x1x1x8xf32>
    %69 = vector.shape_cast %68 : vector<1x1x1x8xf32> to vector<1x8xf32>
    %70 = vector.broadcast %69 : vector<1x8xf32> to vector<16x8xf32>
    %71 = arith.addf %67, %70 : vector<16x8xf32>
    %c1_50 = arith.constant 1 : index
    %c1_51 = arith.constant 1 : index
    %c0_52 = arith.constant 0 : index
    %c0_53 = arith.constant 0 : index
    %72 = vector.load %arg4[%c1_50, %c1_51, %c0_52, %c0_53] : memref<3x4x32x8xbf16, #tpu.memory_space<vmem>>, vector<1x1x32x8xbf16>
    %73 = vector.shape_cast %72 : vector<1x1x32x8xbf16> to vector<32x8xbf16>
    %cst_54 = arith.constant dense<0.000000e+00> : vector<16x8xf32>
    %74 = tpu.matmul %26, %73, %cst_54 {dimension_numbers = #tpu.dot_dimension_numbers<[1], [0], [0], [1], [0, 0, 1, 1], [], []>} : vector<16x32xbf16>, vector<32x8xbf16>, vector<16x8xf32> -> vector<16x8xf32>
    %c1_55 = arith.constant 1 : index
    %c1_56 = arith.constant 1 : index
    %c0_57 = arith.constant 0 : index
    %c0_58 = arith.constant 0 : index
    %75 = vector.load %arg5[%c1_55, %c1_56, %c0_57, %c0_58] : memref<3x4x1x8xf32, #tpu.memory_space<vmem>>, vector<1x1x1x8xf32>
    %76 = vector.shape_cast %75 : vector<1x1x1x8xf32> to vector<1x8xf32>
    %77 = vector.broadcast %76 : vector<1x8xf32> to vector<16x8xf32>
    %78 = arith.addf %74, %77 : vector<16x8xf32>
    %c2_59 = arith.constant 2 : index
    %c1_60 = arith.constant 1 : index
    %c0_61 = arith.constant 0 : index
    %c0_62 = arith.constant 0 : index
    %79 = vector.load %arg4[%c2_59, %c1_60, %c0_61, %c0_62] : memref<3x4x32x8xbf16, #tpu.memory_space<vmem>>, vector<1x1x32x8xbf16>
    %80 = vector.shape_cast %79 : vector<1x1x32x8xbf16> to vector<32x8xbf16>
    %cst_63 = arith.constant dense<0.000000e+00> : vector<16x8xf32>
    %81 = tpu.matmul %26, %80, %cst_63 {dimension_numbers = #tpu.dot_dimension_numbers<[1], [0], [0], [1], [0, 0, 1, 1], [], []>} : vector<16x32xbf16>, vector<32x8xbf16>, vector<16x8xf32> -> vector<16x8xf32>
    %c2_64 = arith.constant 2 : index
    %c1_65 = arith.constant 1 : index
    %c0_66 = arith.constant 0 : index
    %c0_67 = arith.constant 0 : index
    %82 = vector.load %arg5[%c2_64, %c1_65, %c0_66, %c0_67] : memref<3x4x1x8xf32, #tpu.memory_space<vmem>>, vector<1x1x1x8xf32>
    %83 = vector.shape_cast %82 : vector<1x1x1x8xf32> to vector<1x8xf32>
    %84 = vector.broadcast %83 : vector<1x8xf32> to vector<16x8xf32>
    %85 = arith.addf %81, %84 : vector<16x8xf32>
    %86 = arith.truncf %71 : vector<16x8xf32> to vector<16x8xbf16>
    %87 = arith.truncf %78 : vector<16x8xf32> to vector<16x8xbf16>
    %cst_68 = arith.constant dense<0.000000e+00> : vector<16x16xf32>
    %88 = tpu.matmul %86, %87, %cst_68 {dimension_numbers = #tpu.dot_dimension_numbers<[1], [1], [0], [0], [0, 0, 1, 0], [], []>} : vector<16x8xbf16>, vector<16x8xbf16>, vector<16x16xf32> -> vector<16x16xf32>
    %cst_69 = arith.constant dense<0xFF800000> : vector<16xf32>
    %89 = vector.multi_reduction <maximumf>, %88, %cst_69 [1] : vector<16x16xf32> to vector<16xf32>
    %90 = vector.shape_cast %89 : vector<16xf32> to vector<16x1xf32>
    %91 = vector.broadcast %90 : vector<16x1xf32> to vector<16x16xf32>
    %92 = arith.subf %88, %91 : vector<16x16xf32>
    %93 = math.exp %92 : vector<16x16xf32>
    %cst_70 = arith.constant dense<0.000000e+00> : vector<16xf32>
    %94 = vector.multi_reduction <add>, %93, %cst_70 [1] : vector<16x16xf32> to vector<16xf32>
    %95 = vector.shape_cast %94 : vector<16xf32> to vector<16x1xf32>
    %96 = tpu.reciprocal %95 {approx = true} : vector<16x1xf32> -> vector<16x1xf32>
    %97 = vector.broadcast %96 : vector<16x1xf32> to vector<16x16xf32>
    %98 = arith.mulf %93, %97 : vector<16x16xf32>
    %99 = arith.truncf %98 : vector<16x16xf32> to vector<16x16xbf16>
    %100 = arith.truncf %85 : vector<16x8xf32> to vector<16x8xbf16>
    %cst_71 = arith.constant dense<0.000000e+00> : vector<16x8xf32>
    %101 = tpu.matmul %99, %100, %cst_71 {dimension_numbers = #tpu.dot_dimension_numbers<[1], [0], [0], [1], [0, 0, 1, 1], [], []>} : vector<16x16xbf16>, vector<16x8xbf16>, vector<16x8xf32> -> vector<16x8xf32>
    %c0_72 = arith.constant 0 : index
    %c8 = arith.constant 8 : index
    %102 = vector.load %arg15[%c0_72, %c8] : memref<16x32xf32, #tpu.memory_space<vmem>>, vector<16x8xf32>
    tpu.vector_store %arg15[%c0_72, %c8], %101 {strides = array<i32>} : memref<16x32xf32, #tpu.memory_space<vmem>>, vector<16x8xf32>,
    %c0_73 = arith.constant 0 : index
    %c2_74 = arith.constant 2 : index
    %c0_75 = arith.constant 0 : index
    %c0_76 = arith.constant 0 : index
    %103 = vector.load %arg4[%c0_73, %c2_74, %c0_75, %c0_76] : memref<3x4x32x8xbf16, #tpu.memory_space<vmem>>, vector<1x1x32x8xbf16>
    %104 = vector.shape_cast %103 : vector<1x1x32x8xbf16> to vector<32x8xbf16>
    %cst_77 = arith.constant dense<0.000000e+00> : vector<16x8xf32>
    %105 = tpu.matmul %26, %104, %cst_77 {dimension_numbers = #tpu.dot_dimension_numbers<[1], [0], [0], [1], [0, 0, 1, 1], [], []>} : vector<16x32xbf16>, vector<32x8xbf16>, vector<16x8xf32> -> vector<16x8xf32>
    %c0_78 = arith.constant 0 : index
    %c2_79 = arith.constant 2 : index
    %c0_80 = arith.constant 0 : index
    %c0_81 = arith.constant 0 : index
    %106 = vector.load %arg5[%c0_78, %c2_79, %c0_80, %c0_81] : memref<3x4x1x8xf32, #tpu.memory_space<vmem>>, vector<1x1x1x8xf32>
    %107 = vector.shape_cast %106 : vector<1x1x1x8xf32> to vector<1x8xf32>
    %108 = vector.broadcast %107 : vector<1x8xf32> to vector<16x8xf32>
    %109 = arith.addf %105, %108 : vector<16x8xf32>
    %c1_82 = arith.constant 1 : index
    %c2_83 = arith.constant 2 : index
    %c0_84 = arith.constant 0 : index
    %c0_85 = arith.constant 0 : index
    %110 = vector.load %arg4[%c1_82, %c2_83, %c0_84, %c0_85] : memref<3x4x32x8xbf16, #tpu.memory_space<vmem>>, vector<1x1x32x8xbf16>
    %111 = vector.shape_cast %110 : vector<1x1x32x8xbf16> to vector<32x8xbf16>
    %cst_86 = arith.constant dense<0.000000e+00> : vector<16x8xf32>
    %112 = tpu.matmul %26, %111, %cst_86 {dimension_numbers = #tpu.dot_dimension_numbers<[1], [0], [0], [1], [0, 0, 1, 1], [], []>} : vector<16x32xbf16>, vector<32x8xbf16>, vector<16x8xf32> -> vector<16x8xf32>
    %c1_87 = arith.constant 1 : index
    %c2_88 = arith.constant 2 : index
    %c0_89 = arith.constant 0 : index
    %c0_90 = arith.constant 0 : index
    %113 = vector.load %arg5[%c1_87, %c2_88, %c0_89, %c0_90] : memref<3x4x1x8xf32, #tpu.memory_space<vmem>>, vector<1x1x1x8xf32>
    %114 = vector.shape_cast %113 : vector<1x1x1x8xf32> to vector<1x8xf32>
    %115 = vector.broadcast %114 : vector<1x8xf32> to vector<16x8xf32>
    %116 = arith.addf %112, %115 : vector<16x8xf32>
    %c2_91 = arith.constant 2 : index
    %c2_92 = arith.constant 2 : index
    %c0_93 = arith.constant 0 : index
    %c0_94 = arith.constant 0 : index
    %117 = vector.load %arg4[%c2_91, %c2_92, %c0_93, %c0_94] : memref<3x4x32x8xbf16, #tpu.memory_space<vmem>>, vector<1x1x32x8xbf16>
    %118 = vector.shape_cast %117 : vector<1x1x32x8xbf16> to vector<32x8xbf16>
    %cst_95 = arith.constant dense<0.000000e+00> : vector<16x8xf32>
    %119 = tpu.matmul %26, %118, %cst_95 {dimension_numbers = #tpu.dot_dimension_numbers<[1], [0], [0], [1], [0, 0, 1, 1], [], []>} : vector<16x32xbf16>, vector<32x8xbf16>, vector<16x8xf32> -> vector<16x8xf32>
    %c2_96 = arith.constant 2 : index
    %c2_97 = arith.constant 2 : index
    %c0_98 = arith.constant 0 : index
    %c0_99 = arith.constant 0 : index
    %120 = vector.load %arg5[%c2_96, %c2_97, %c0_98, %c0_99] : memref<3x4x1x8xf32, #tpu.memory_space<vmem>>, vector<1x1x1x8xf32>
    %121 = vector.shape_cast %120 : vector<1x1x1x8xf32> to vector<1x8xf32>
    %122 = vector.broadcast %121 : vector<1x8xf32> to vector<16x8xf32>
    %123 = arith.addf %119, %122 : vector<16x8xf32>
    %124 = arith.truncf %109 : vector<16x8xf32> to vector<16x8xbf16>
    %125 = arith.truncf %116 : vector<16x8xf32> to vector<16x8xbf16>
    %cst_100 = arith.constant dense<0.000000e+00> : vector<16x16xf32>
    %126 = tpu.matmul %124, %125, %cst_100 {dimension_numbers = #tpu.dot_dimension_numbers<[1], [1], [0], [0], [0, 0, 1, 0], [], []>} : vector<16x8xbf16>, vector<16x8xbf16>, vector<16x16xf32> -> vector<16x16xf32>
    %cst_101 = arith.constant dense<0xFF800000> : vector<16xf32>
    %127 = vector.multi_reduction <maximumf>, %126, %cst_101 [1] : vector<16x16xf32> to vector<16xf32>
    %128 = vector.shape_cast %127 : vector<16xf32> to vector<16x1xf32>
    %129 = vector.broadcast %128 : vector<16x1xf32> to vector<16x16xf32>
    %130 = arith.subf %126, %129 : vector<16x16xf32>
    %131 = math.exp %130 : vector<16x16xf32>
    %cst_102 = arith.constant dense<0.000000e+00> : vector<16xf32>
    %132 = vector.multi_reduction <add>, %131, %cst_102 [1] : vector<16x16xf32> to vector<16xf32>
    %133 = vector.shape_cast %132 : vector<16xf32> to vector<16x1xf32>
    %134 = tpu.reciprocal %133 {approx = true} : vector<16x1xf32> -> vector<16x1xf32>
    %135 = vector.broadcast %134 : vector<16x1xf32> to vector<16x16xf32>
    %136 = arith.mulf %131, %135 : vector<16x16xf32>
    %137 = arith.truncf %136 : vector<16x16xf32> to vector<16x16xbf16>
    %138 = arith.truncf %123 : vector<16x8xf32> to vector<16x8xbf16>
    %cst_103 = arith.constant dense<0.000000e+00> : vector<16x8xf32>
    %139 = tpu.matmul %137, %138, %cst_103 {dimension_numbers = #tpu.dot_dimension_numbers<[1], [0], [0], [1], [0, 0, 1, 1], [], []>} : vector<16x16xbf16>, vector<16x8xbf16>, vector<16x8xf32> -> vector<16x8xf32>
    %c0_104 = arith.constant 0 : index
    %c16 = arith.constant 16 : index
    %140 = vector.load %arg15[%c0_104, %c16] : memref<16x32xf32, #tpu.memory_space<vmem>>, vector<16x8xf32>
    tpu.vector_store %arg15[%c0_104, %c16], %139 {strides = array<i32>} : memref<16x32xf32, #tpu.memory_space<vmem>>, vector<16x8xf32>,
    %c0_105 = arith.constant 0 : index
    %c3 = arith.constant 3 : index
    %c0_106 = arith.constant 0 : index
    %c0_107 = arith.constant 0 : index
    %141 = vector.load %arg4[%c0_105, %c3, %c0_106, %c0_107] : memref<3x4x32x8xbf16, #tpu.memory_space<vmem>>, vector<1x1x32x8xbf16>
    %142 = vector.shape_cast %141 : vector<1x1x32x8xbf16> to vector<32x8xbf16>
    %cst_108 = arith.constant dense<0.000000e+00> : vector<16x8xf32>
    %143 = tpu.matmul %26, %142, %cst_108 {dimension_numbers = #tpu.dot_dimension_numbers<[1], [0], [0], [1], [0, 0, 1, 1], [], []>} : vector<16x32xbf16>, vector<32x8xbf16>, vector<16x8xf32> -> vector<16x8xf32>
    %c0_109 = arith.constant 0 : index
    %c3_110 = arith.constant 3 : index
    %c0_111 = arith.constant 0 : index
    %c0_112 = arith.constant 0 : index
    %144 = vector.load %arg5[%c0_109, %c3_110, %c0_111, %c0_112] : memref<3x4x1x8xf32, #tpu.memory_space<vmem>>, vector<1x1x1x8xf32>
    %145 = vector.shape_cast %144 : vector<1x1x1x8xf32> to vector<1x8xf32>
    %146 = vector.broadcast %145 : vector<1x8xf32> to vector<16x8xf32>
    %147 = arith.addf %143, %146 : vector<16x8xf32>
    %c1_113 = arith.constant 1 : index
    %c3_114 = arith.constant 3 : index
    %c0_115 = arith.constant 0 : index
    %c0_116 = arith.constant 0 : index
    %148 = vector.load %arg4[%c1_113, %c3_114, %c0_115, %c0_116] : memref<3x4x32x8xbf16, #tpu.memory_space<vmem>>, vector<1x1x32x8xbf16>
    %149 = vector.shape_cast %148 : vector<1x1x32x8xbf16> to vector<32x8xbf16>
    %cst_117 = arith.constant dense<0.000000e+00> : vector<16x8xf32>
    %150 = tpu.matmul %26, %149, %cst_117 {dimension_numbers = #tpu.dot_dimension_numbers<[1], [0], [0], [1], [0, 0, 1, 1], [], []>} : vector<16x32xbf16>, vector<32x8xbf16>, vector<16x8xf32> -> vector<16x8xf32>
    %c1_118 = arith.constant 1 : index
    %c3_119 = arith.constant 3 : index
    %c0_120 = arith.constant 0 : index
    %c0_121 = arith.constant 0 : index
    %151 = vector.load %arg5[%c1_118, %c3_119, %c0_120, %c0_121] : memref<3x4x1x8xf32, #tpu.memory_space<vmem>>, vector<1x1x1x8xf32>
    %152 = vector.shape_cast %151 : vector<1x1x1x8xf32> to vector<1x8xf32>
    %153 = vector.broadcast %152 : vector<1x8xf32> to vector<16x8xf32>
    %154 = arith.addf %150, %153 : vector<16x8xf32>
    %c2_122 = arith.constant 2 : index
    %c3_123 = arith.constant 3 : index
    %c0_124 = arith.constant 0 : index
    %c0_125 = arith.constant 0 : index
    %155 = vector.load %arg4[%c2_122, %c3_123, %c0_124, %c0_125] : memref<3x4x32x8xbf16, #tpu.memory_space<vmem>>, vector<1x1x32x8xbf16>
    %156 = vector.shape_cast %155 : vector<1x1x32x8xbf16> to vector<32x8xbf16>
    %cst_126 = arith.constant dense<0.000000e+00> : vector<16x8xf32>
    %157 = tpu.matmul %26, %156, %cst_126 {dimension_numbers = #tpu.dot_dimension_numbers<[1], [0], [0], [1], [0, 0, 1, 1], [], []>} : vector<16x32xbf16>, vector<32x8xbf16>, vector<16x8xf32> -> vector<16x8xf32>
    %c2_127 = arith.constant 2 : index
    %c3_128 = arith.constant 3 : index
    %c0_129 = arith.constant 0 : index
    %c0_130 = arith.constant 0 : index
    %158 = vector.load %arg5[%c2_127, %c3_128, %c0_129, %c0_130] : memref<3x4x1x8xf32, #tpu.memory_space<vmem>>, vector<1x1x1x8xf32>
    %159 = vector.shape_cast %158 : vector<1x1x1x8xf32> to vector<1x8xf32>
    %160 = vector.broadcast %159 : vector<1x8xf32> to vector<16x8xf32>
    %161 = arith.addf %157, %160 : vector<16x8xf32>
    %162 = arith.truncf %147 : vector<16x8xf32> to vector<16x8xbf16>
    %163 = arith.truncf %154 : vector<16x8xf32> to vector<16x8xbf16>
    %cst_131 = arith.constant dense<0.000000e+00> : vector<16x16xf32>
    %164 = tpu.matmul %162, %163, %cst_131 {dimension_numbers = #tpu.dot_dimension_numbers<[1], [1], [0], [0], [0, 0, 1, 0], [], []>} : vector<16x8xbf16>, vector<16x8xbf16>, vector<16x16xf32> -> vector<16x16xf32>
    %cst_132 = arith.constant dense<0xFF800000> : vector<16xf32>
    %165 = vector.multi_reduction <maximumf>, %164, %cst_132 [1] : vector<16x16xf32> to vector<16xf32>
    %166 = vector.shape_cast %165 : vector<16xf32> to vector<16x1xf32>
    %167 = vector.broadcast %166 : vector<16x1xf32> to vector<16x16xf32>
    %168 = arith.subf %164, %167 : vector<16x16xf32>
    %169 = math.exp %168 : vector<16x16xf32>
    %cst_133 = arith.constant dense<0.000000e+00> : vector<16xf32>
    %170 = vector.multi_reduction <add>, %169, %cst_133 [1] : vector<16x16xf32> to vector<16xf32>
    %171 = vector.shape_cast %170 : vector<16xf32> to vector<16x1xf32>
    %172 = tpu.reciprocal %171 {approx = true} : vector<16x1xf32> -> vector<16x1xf32>
    %173 = vector.broadcast %172 : vector<16x1xf32> to vector<16x16xf32>
    %174 = arith.mulf %169, %173 : vector<16x16xf32>
    %175 = arith.truncf %174 : vector<16x16xf32> to vector<16x16xbf16>
    %176 = arith.truncf %161 : vector<16x8xf32> to vector<16x8xbf16>
    %cst_134 = arith.constant dense<0.000000e+00> : vector<16x8xf32>
    %177 = tpu.matmul %175, %176, %cst_134 {dimension_numbers = #tpu.dot_dimension_numbers<[1], [0], [0], [1], [0, 0, 1, 1], [], []>} : vector<16x16xbf16>, vector<16x8xbf16>, vector<16x8xf32> -> vector<16x8xf32>
    %c0_135 = arith.constant 0 : index
    %c24 = arith.constant 24 : index
    %178 = vector.load %arg15[%c0_135, %c24] : memref<16x32xf32, #tpu.memory_space<vmem>>, vector<16x8xf32>
    tpu.vector_store %arg15[%c0_135, %c24], %177 {strides = array<i32>} : memref<16x32xf32, #tpu.memory_space<vmem>>, vector<16x8xf32>,
    %c0_136 = arith.constant 0 : index
    %c0_137 = arith.constant 0 : index
    %179 = vector.load %arg15[%c0_136, %c0_137] : memref<16x32xf32, #tpu.memory_space<vmem>>, vector<16x32xf32>
    %180 = arith.truncf %179 : vector<16x32xf32> to vector<16x32xbf16>
    %c0_138 = arith.constant 0 : index
    %c0_139 = arith.constant 0 : index
    %181 = vector.load %arg6[%c0_138, %c0_139] : memref<32x32xbf16, #tpu.memory_space<vmem>>, vector<32x32xbf16>
    %cst_140 = arith.constant dense<0.000000e+00> : vector<16x32xf32>
    %182 = tpu.matmul %180, %181, %cst_140 {dimension_numbers = #tpu.dot_dimension_numbers<[1], [0], [0], [1], [0, 0, 1, 1], [], []>} : vector<16x32xbf16>, vector<32x32xbf16>, vector<16x32xf32> -> vector<16x32xf32>
    %183 = arith.addf %1, %182 : vector<16x32xf32>
    %c0_141 = arith.constant 0 : index
    %c0_142 = arith.constant 0 : index
    %184 = vector.load %arg7[%c0_141, %c0_142] : memref<1x32xf32, #tpu.memory_space<vmem>>, vector<1x32xf32>
    %185 = vector.broadcast %184 : vector<1x32xf32> to vector<16x32xf32>
    %186 = arith.addf %183, %185 : vector<16x32xf32>
    %c0_143 = arith.constant 0 : index
    %c0_144 = arith.constant 0 : index
    %187 = vector.load %arg8[%c0_143, %c0_144] : memref<1x32xf32, #tpu.memory_space<vmem>>, vector<1x32xf32>
    %c0_145 = arith.constant 0 : index
    %c0_146 = arith.constant 0 : index
    %188 = vector.load %arg9[%c0_145, %c0_146] : memref<1x32xf32, #tpu.memory_space<vmem>>, vector<1x32xf32>
    %cst_147 = arith.constant dense<0.000000e+00> : vector<16xf32>
    %189 = vector.multi_reduction <add>, %186, %cst_147 [1] : vector<16x32xf32> to vector<16xf32>
    %190 = vector.shape_cast %189 : vector<16xf32> to vector<16x1xf32>
    %cst_148 = arith.constant 3.200000e+01 : f32
    %191 = vector.broadcast %cst_148 : f32 to vector<16x1xf32>
    %192 = arith.divf %190, %191 : vector<16x1xf32>
    %193 = vector.broadcast %192 : vector<16x1xf32> to vector<16x32xf32>
    %194 = arith.subf %186, %193 : vector<16x32xf32>
    %195 = arith.mulf %194, %194 : vector<16x32xf32>
    %cst_149 = arith.constant dense<0.000000e+00> : vector<16xf32>
    %196 = vector.multi_reduction <add>, %195, %cst_149 [1] : vector<16x32xf32> to vector<16xf32>
    %197 = vector.shape_cast %196 : vector<16xf32> to vector<16x1xf32>
    %cst_150 = arith.constant 3.200000e+01 : f32
    %198 = vector.broadcast %cst_150 : f32 to vector<16x1xf32>
    %199 = arith.divf %197, %198 : vector<16x1xf32>
    %200 = vector.broadcast %192 : vector<16x1xf32> to vector<16x32xf32>
    %201 = arith.subf %186, %200 : vector<16x32xf32>
    %cst_151 = arith.constant 9.99999997E-7 : f32
    %202 = vector.broadcast %cst_151 : f32 to vector<16x1xf32>
    %203 = arith.addf %199, %202 : vector<16x1xf32>
    %204 = math.rsqrt %203 : vector<16x1xf32>
    %205 = vector.broadcast %204 : vector<16x1xf32> to vector<16x32xf32>
    %206 = arith.mulf %201, %205 : vector<16x32xf32>
    %207 = vector.broadcast %187 : vector<1x32xf32> to vector<16x32xf32>
    %208 = arith.mulf %206, %207 : vector<16x32xf32>
    %209 = vector.broadcast %188 : vector<1x32xf32> to vector<16x32xf32>
    %210 = arith.addf %208, %209 : vector<16x32xf32>
    %211 = arith.truncf %210 : vector<16x32xf32> to vector<16x32xbf16>
    %c0_152 = arith.constant 0 : index
    %c0_153 = arith.constant 0 : index
    %212 = vector.load %arg10[%c0_152, %c0_153] : memref<32x64xbf16, #tpu.memory_space<vmem>>, vector<32x64xbf16>
    %cst_154 = arith.constant dense<0.000000e+00> : vector<16x64xf32>
    %213 = tpu.matmul %211, %212, %cst_154 {dimension_numbers = #tpu.dot_dimension_numbers<[1], [0], [0], [1], [0, 0, 1, 1], [], []>} : vector<16x32xbf16>, vector<32x64xbf16>, vector<16x64xf32> -> vector<16x64xf32>
    %c0_155 = arith.constant 0 : index
    %c0_156 = arith.constant 0 : index
    %214 = vector.load %arg11[%c0_155, %c0_156] : memref<1x64xf32, #tpu.memory_space<vmem>>, vector<1x64xf32>
    %215 = vector.broadcast %214 : vector<1x64xf32> to vector<16x64xf32>
    %216 = arith.addf %213, %215 : vector<16x64xf32>
    %cst_157 = arith.constant 0.636619746 : f32
    %217 = math.sqrt %cst_157 : f32
    %cst_158 = arith.constant 5.000000e-01 : f32
    %218 = vector.broadcast %cst_158 : f32 to vector<16x64xf32>
    %219 = arith.mulf %218, %216 : vector<16x64xf32>
    %cst_159 = arith.constant 4.471500e-02 : f32
    %220 = vector.broadcast %cst_159 : f32 to vector<16x64xf32>
    %221 = arith.mulf %220, %216 : vector<16x64xf32>
    %222 = arith.mulf %221, %216 : vector<16x64xf32>
    %223 = arith.mulf %222, %216 : vector<16x64xf32>
    %224 = arith.addf %216, %223 : vector<16x64xf32>
    %225 = vector.broadcast %217 : f32 to vector<16x64xf32>
    %226 = arith.mulf %225, %224 : vector<16x64xf32>
    %227 = math.tanh %226 : vector<16x64xf32>
    %cst_160 = arith.constant 1.000000e+00 : f32
    %228 = vector.broadcast %cst_160 : f32 to vector<16x64xf32>
    %229 = arith.addf %228, %227 : vector<16x64xf32>
    %230 = arith.mulf %219, %229 : vector<16x64xf32>
    %231 = arith.truncf %230 : vector<16x64xf32> to vector<16x64xbf16>
    %c0_161 = arith.constant 0 : index
    %c0_162 = arith.constant 0 : index
    %232 = vector.load %arg12[%c0_161, %c0_162] : memref<64x32xbf16, #tpu.memory_space<vmem>>, vector<64x32xbf16>
    %cst_163 = arith.constant dense<0.000000e+00> : vector<16x32xf32>
    %233 = tpu.matmul %231, %232, %cst_163 {dimension_numbers = #tpu.dot_dimension_numbers<[1], [0], [0], [1], [0, 0, 1, 1], [], []>} : vector<16x64xbf16>, vector<64x32xbf16>, vector<16x32xf32> -> vector<16x32xf32>
    %c0_164 = arith.constant 0 : index
    %c0_165 = arith.constant 0 : index
    %234 = vector.load %arg13[%c0_164, %c0_165] : memref<1x32xf32, #tpu.memory_space<vmem>>, vector<1x32xf32>
    %235 = vector.broadcast %234 : vector<1x32xf32> to vector<16x32xf32>
    %236 = arith.addf %233, %235 : vector<16x32xf32>
    %237 = arith.addf %186, %236 : vector<16x32xf32>
    %c0_166 = arith.constant 0 : index
    %c0_167 = arith.constant 0 : index
    %c0_168 = arith.constant 0 : index
    %238 = vector.load %arg14[%c0_166, %c0_167, %c0_168] : memref<1x16x32xf32, #tpu.memory_space<vmem>>, vector<1x16x32xf32>
    %239 = vector.shape_cast %238 : vector<1x16x32xf32> to vector<16x32xf32>
    %240 = vector.shape_cast %237 : vector<16x32xf32> to vector<1x16x32xf32>
    tpu.vector_store %arg14[%c0_166, %c0_167, %c0_168], %240 {strides = array<i32>} : memref<1x16x32xf32, #tpu.memory_space<vmem>>, vector<1x16x32xf32>,
    return
  }
  func.func @transform_0(%arg0: i32) -> (i32, i32, i32) {
    %c0_i32 = arith.constant 0 : i32
    %c0_i32_0 = arith.constant 0 : i32
    %c0_i32_1 = arith.constant 0 : i32
    return %arg0, %c0_i32, %c0_i32_0 : i32, i32, i32
  }
  func.func @transform_1(%arg0: i32) -> (i32, i32) {
    %c0_i32 = arith.constant 0 : i32
    %c0_i32_0 = arith.constant 0 : i32
    %c0_i32_1 = arith.constant 0 : i32
    return %c0_i32, %c0_i32_0 : i32, i32
  }
  func.func @transform_2(%arg0: i32) -> (i32, i32) {
    %c0_i32 = arith.constant 0 : i32
    %c0_i32_0 = arith.constant 0 : i32
    %c0_i32_1 = arith.constant 0 : i32
    return %c0_i32, %c0_i32_0 : i32, i32
  }
  func.func @transform_3(%arg0: i32) -> (i32, i32, i32, i32) {
    %c0_i32 = arith.constant 0 : i32
    %c0_i32_0 = arith.constant 0 : i32
    %c0_i32_1 = arith.constant 0 : i32
    %c0_i32_2 = arith.constant 0 : i32
    %c0_i32_3 = arith.constant 0 : i32
    return %c0_i32, %c0_i32_0, %c0_i32_1, %c0_i32_2 : i32, i32, i32, i32
  }
  func.func @transform_4(%arg0: i32) -> (i32, i32, i32, i32) {
    %c0_i32 = arith.constant 0 : i32
    %c0_i32_0 = arith.constant 0 : i32
    %c0_i32_1 = arith.constant 0 : i32
    %c0_i32_2 = arith.constant 0 : i32
    %c0_i32_3 = arith.constant 0 : i32
    return %c0_i32, %c0_i32_0, %c0_i32_1, %c0_i32_2 : i32, i32, i32, i32
  }
  func.func @transform_5(%arg0: i32) -> (i32, i32) {
    %c0_i32 = arith.constant 0 : i32
    %c0_i32_0 = arith.constant 0 : i32
    %c0_i32_1 = arith.constant 0 : i32
    return %c0_i32, %c0_i32_0 : i32, i32
  }
  func.func @transform_6(%arg0: i32) -> (i32, i32) {
    %c0_i32 = arith.constant 0 : i32
    %c0_i32_0 = arith.constant 0 : i32
    %c0_i32_1 = arith.constant 0 : i32
    return %c0_i32, %c0_i32_0 : i32, i32
  }
  func.func @transform_7(%arg0: i32) -> (i32, i32) {
    %c0_i32 = arith.constant 0 : i32
    %c0_i32_0 = arith.constant 0 : i32
    %c0_i32_1 = arith.constant 0 : i32
    return %c0_i32, %c0_i32_0 : i32, i32
  }
  func.func @transform_8(%arg0: i32) -> (i32, i32) {
    %c0_i32 = arith.constant 0 : i32
    %c0_i32_0 = arith.constant 0 : i32
    %c0_i32_1 = arith.constant 0 : i32
    return %c0_i32, %c0_i32_0 : i32, i32
  }
  func.func @transform_9(%arg0: i32) -> (i32, i32) {
    %c0_i32 = arith.constant 0 : i32
    %c0_i32_0 = arith.constant 0 : i32
    %c0_i32_1 = arith.constant 0 : i32
    return %c0_i32, %c0_i32_0 : i32, i32
  }
  func.func @transform_10(%arg0: i32) -> (i32, i32) {
    %c0_i32 = arith.constant 0 : i32
    %c0_i32_0 = arith.constant 0 : i32
    %c0_i32_1 = arith.constant 0 : i32
    return %c0_i32, %c0_i32_0 : i32, i32
  }
  func.func @transform_11(%arg0: i32) -> (i32, i32) {
    %c0_i32 = arith.constant 0 : i32
    %c0_i32_0 = arith.constant 0 : i32
    %c0_i32_1 = arith.constant 0 : i32
    return %c0_i32, %c0_i32_0 : i32, i32
  }
  func.func @transform_12(%arg0: i32) -> (i32, i32) {
    %c0_i32 = arith.constant 0 : i32
    %c0_i32_0 = arith.constant 0 : i32
    %c0_i32_1 = arith.constant 0 : i32
    return %c0_i32, %c0_i32_0 : i32, i32
  }
  func.func @transform_13(%arg0: i32) -> (i32, i32, i32) {
    %c0_i32 = arith.constant 0 : i32
    %c0_i32_0 = arith.constant 0 : i32
    %c0_i32_1 = arith.constant 0 : i32
    return %arg0, %c0_i32, %c0_i32_0 : i32, i32, i32
  }
}

</mosaic_0001>

<llo_original>
// kernel: tpu_custom_call.1
$region0: #{tpu_custom_call.1}
  #allocation0 [shape = 'u32[]', space=smem, size = 0x4, offset = 0x4, fixed_abs, tag = 'smem constant byte address 0x4 - core index']
  #allocation1 [shape = 'u32[144,128]{1,0:T(1,128)}', space=vmem, size = 0x12000, scoped, tag = 'internal scratch']
  #allocation2 [shape = 'f32[16,32]{1,0:T(8,128)}', space=vmem, size = 0x2000, scoped, tag = 'scratch operand']
  %s0 = inlined_call_operand.vmem [shape: f32[2,16,32], index: 0, kind: input, shape index: {}]
  %s1 = inlined_call_operand.vmem [shape: f32[1,32], index: 1, kind: input, shape index: {}]
  %s2 = inlined_call_operand.vmem [shape: f32[1,32], index: 2, kind: input, shape index: {}]
  %s3 = inlined_call_operand.vmem [shape: bf16[3,4,32,8], index: 3, kind: input, shape index: {}]
  %s4 = inlined_call_operand.vmem [shape: f32[3,4,1,8], index: 4, kind: input, shape index: {}]
  %s5 = inlined_call_operand.vmem [shape: bf16[32,32], index: 5, kind: input, shape index: {}]
  %s6 = inlined_call_operand.vmem [shape: f32[1,32], index: 6, kind: input, shape index: {}]
  %s7 = inlined_call_operand.vmem [shape: f32[1,32], index: 7, kind: input, shape index: {}]
  %s8 = inlined_call_operand.vmem [shape: f32[1,32], index: 8, kind: input, shape index: {}]
  %s9 = inlined_call_operand.vmem [shape: bf16[32,64], index: 9, kind: input, shape index: {}]
  %s10 = inlined_call_operand.vmem [shape: f32[1,64], index: 10, kind: input, shape index: {}]
  %s11 = inlined_call_operand.vmem [shape: bf16[64,32], index: 11, kind: input, shape index: {}]
  %s12 = inlined_call_operand.vmem [shape: f32[1,32], index: 12, kind: input, shape index: {}]
  %s13 = inlined_call_operand.hbm [shape: f32[2,16,32], index: 13, kind: output, shape index: {}]
  %s14 = sld [smem:[#allocation0]]
  $region85: #{tpu_custom_call.1} parent=0
    _
  %s16 = ssub.s32 1, %s14
  %s17 = scalar_select 0, %s16, %s14
  $region1: #{tpu_custom_call.1} parent=0
    #allocation3 [shape = 'u8[16384]{0}', space=vmem, size = 0x4000, scoped, tag = 'output window, operand 0']
    #allocation4 [shape = 's32[2]{0}', space=sflag, size = 0x8, scoped, tag = 'scoped memory for tpu_custom_call.1']
    %18 = vsyncpa [#allocation4], 0
    %s19 = scalar_lea.sflag [#allocation4], 1
    %20 = vsyncpa %s19, 0
    loop: start=0, step=1, limit=4
    $region2: #{tpu_custom_call.1} parent=1 // loop_pre_header
      _
    $region3: #{tpu_custom_call.1} parent=1 // loop_header
      %s22 = sphi 0, %s26
      %p23 = scmp.ge.s32.totalorder %s22, 4
      %s32 = sphi 0, %s34
      %s35 = sphi 0, %s32
      %s36 = sphi 0, %s35
      %s52 = sphi 0, %s36
      %s56 = sphi 0, %s56
      %s58 = sphi 0, %s56
      %s59 = sphi 0, %s58
      %s73 = sphi 0, %s59
      %s77 = sphi 0, %s77
      %s79 = sphi 0, %s77
      %s80 = sphi 0, %s79
      %s94 = sphi 0, %s80
      %s98 = sphi 0, %s98
      %s100 = sphi 0, %s98
      %s101 = sphi 0, %s100
      %s115 = sphi 0, %s101
      %s119 = sphi 0, %s119
      %s121 = sphi 0, %s119
      %s122 = sphi 0, %s121
      %s136 = sphi 0, %s122
      %s140 = sphi 0, %s140
      %s142 = sphi 0, %s140
      %s143 = sphi 0, %s142
      %s157 = sphi 0, %s143
      %s161 = sphi 0, %s161
      %s163 = sphi 0, %s161
      %s164 = sphi 0, %s163
      %s178 = sphi 0, %s164
      %s182 = sphi 0, %s182
      %s184 = sphi 0, %s182
      %s185 = sphi 0, %s184
      %s199 = sphi 0, %s185
      %s203 = sphi 0, %s203
      %s205 = sphi 0, %s203
      %s206 = sphi 0, %s205
      %s220 = sphi 0, %s206
      %s224 = sphi 0, %s224
      %s226 = sphi 0, %s224
      %s227 = sphi 0, %s226
      %s241 = sphi 0, %s227
      %s245 = sphi 0, %s245
      %s247 = sphi 0, %s245
      %s248 = sphi 0, %s247
      %s262 = sphi 0, %s248
      %s266 = sphi 0, %s266
      %s268 = sphi 0, %s266
      %s269 = sphi 0, %s268
      %s283 = sphi 0, %s269
      %s287 = sphi 0, %s287
      %s289 = sphi 0, %s287
      %s290 = sphi 0, %s289
      %s304 = sphi 0, %s290
      %s310 = sphi 0, %s312
      %s313 = sphi 0, %s310
      %s314 = sphi 0, %s313
      %s330 = sphi 0, %s314
    $region4: #{tpu_custom_call.1} parent=1 // loop_header_branch
      %25 = sbr.rel (%p23) target = $region8
    $region5: #{tpu_custom_call.1} parent=1 // loop_body
      %s27 = ssub.s32 %s22, 1
      %s28 = ssub.s32 %s22, 2
      %s29 = sadd.s32 %s22, 1
      %s30 = ssub.s32 %s22, %s29
      %p31 = scmp.eq.s32.totalorder %s30, 0
      %s33 = sadd.s32 %s32, 1
      %s34 = scalar_select %p31, %s32, %s33
      %p37 = pneg %p31
      %p38 = scmp.eq.s32.totalorder %s22, 1
      %p39 = por %p37, %p38
      %p40 = scmp.ne.s32.totalorder %s32, %s35
      %p41 = scmp.eq.s32.totalorder %s22, 0
      %p42 = por %p40, %p41
      %p43 = scmp.ne.s32.totalorder %s32, %s35
      %p44 = scmp.eq.s32.totalorder %s27, 1
      %p45 = por %p43, %p44
      %p46 = scmp.ne.s32.totalorder %s35, %s36
      %p47 = scmp.eq.s32.totalorder %s27, 0
      %p48 = por %p46, %p47
      %p49 = scmp.ne.s32.totalorder %s35, %s36
      %p50 = scmp.eq.s32.totalorder %s28, 1
      %p51 = por %p49, %p50
      %p53 = scmp.ne.s32.totalorder %s36, %s52
      %p54 = scmp.eq.s32.totalorder %s28, 0
      %p55 = por %p53, %p54
      %s57 = sadd.s32 %s56, 1
      %p60 = scmp.eq.s32.totalorder %s22, 1
      %p61 = scmp.ne.s32.totalorder %s56, %s58
      %p62 = scmp.eq.s32.totalorder %s22, 0
      %p63 = por %p61, %p62
      %p64 = scmp.ne.s32.totalorder %s56, %s58
      %p65 = scmp.eq.s32.totalorder %s27, 1
      %p66 = por %p64, %p65
      %p67 = scmp.ne.s32.totalorder %s58, %s59
      %p68 = scmp.eq.s32.totalorder %s27, 0
      %p69 = por %p67, %p68
      %p70 = scmp.ne.s32.totalorder %s58, %s59
      %p71 = scmp.eq.s32.totalorder %s28, 1
      %p72 = por %p70, %p71
      %p74 = scmp.ne.s32.totalorder %s59, %s73
      %p75 = scmp.eq.s32.totalorder %s28, 0
      %p76 = por %p74, %p75
      %s78 = sadd.s32 %s77, 1
      %p81 = scmp.eq.s32.totalorder %s22, 1
      %p82 = scmp.ne.s32.totalorder %s77, %s79
      %p83 = scmp.eq.s32.totalorder %s22, 0
      %p84 = por %p82, %p83
      %p85 = scmp.ne.s32.totalorder %s77, %s79
      %p86 = scmp.eq.s32.totalorder %s27, 1
      %p87 = por %p85, %p86
      %p88 = scmp.ne.s32.totalorder %s79, %s80
      %p89 = scmp.eq.s32.totalorder %s27, 0
      %p90 = por %p88, %p89
      %p91 = scmp.ne.s32.totalorder %s79, %s80
      %p92 = scmp.eq.s32.totalorder %s28, 1
      %p93 = por %p91, %p92
      %p95 = scmp.ne.s32.totalorder %s80, %s94
      %p96 = scmp.eq.s32.totalorder %s28, 0
      %p97 = por %p95, %p96
      %s99 = sadd.s32 %s98, 1
      %p102 = scmp.eq.s32.totalorder %s22, 1
      %p103 = scmp.ne.s32.totalorder %s98, %s100
      %p104 = scmp.eq.s32.totalorder %s22, 0
      %p105 = por %p103, %p104
      %p106 = scmp.ne.s32.totalorder %s98, %s100
      %p107 = scmp.eq.s32.totalorder %s27, 1
      %p108 = por %p106, %p107
      %p109 = scmp.ne.s32.totalorder %s100, %s101
      %p110 = scmp.eq.s32.totalorder %s27, 0
      %p111 = por %p109, %p110
      %p112 = scmp.ne.s32.totalorder %s100, %s101
      %p113 = scmp.eq.s32.totalorder %s28, 1
      %p114 = por %p112, %p113
      %p116 = scmp.ne.s32.totalorder %s101, %s115
      %p117 = scmp.eq.s32.totalorder %s28, 0
      %p118 = por %p116, %p117
      %s120 = sadd.s32 %s119, 1
      %p123 = scmp.eq.s32.totalorder %s22, 1
      %p124 = scmp.ne.s32.totalorder %s119, %s121
      %p125 = scmp.eq.s32.totalorder %s22, 0
      %p126 = por %p124, %p125
      %p127 = scmp.ne.s32.totalorder %s119, %s121
      %p128 = scmp.eq.s32.totalorder %s27, 1
      %p129 = por %p127, %p128
      %p130 = scmp.ne.s32.totalorder %s121, %s122
      %p131 = scmp.eq.s32.totalorder %s27, 0
      %p132 = por %p130, %p131
      %p133 = scmp.ne.s32.totalorder %s121, %s122
      %p134 = scmp.eq.s32.totalorder %s28, 1
      %p135 = por %p133, %p134
      %p137 = scmp.ne.s32.totalorder %s122, %s136
      %p138 = scmp.eq.s32.totalorder %s28, 0
      %p139 = por %p137, %p138
      %s141 = sadd.s32 %s140, 1
      %p144 = scmp.eq.s32.totalorder %s22, 1
      %p145 = scmp.ne.s32.totalorder %s140, %s142
      %p146 = scmp.eq.s32.totalorder %s22, 0
      %p147 = por %p145, %p146
      %p148 = scmp.ne.s32.totalorder %s140, %s142
      %p149 = scmp.eq.s32.totalorder %s27, 1
      %p150 = por %p148, %p149
      %p151 = scmp.ne.s32.totalorder %s142, %s143
      %p152 = scmp.eq.s32.totalorder %s27, 0
      %p153 = por %p151, %p152
      %p154 = scmp.ne.s32.totalorder %s142, %s143
      %p155 = scmp.eq.s32.totalorder %s28, 1
      %p156 = por %p154, %p155
      %p158 = scmp.ne.s32.totalorder %s143, %s157
      %p159 = scmp.eq.s32.totalorder %s28, 0
      %p160 = por %p158, %p159
      %s162 = sadd.s32 %s161, 1
      %p165 = scmp.eq.s32.totalorder %s22, 1
      %p166 = scmp.ne.s32.totalorder %s161, %s163
      %p167 = scmp.eq.s32.totalorder %s22, 0
      %p168 = por %p166, %p167
      %p169 = scmp.ne.s32.totalorder %s161, %s163
      %p170 = scmp.eq.s32.totalorder %s27, 1
      %p171 = por %p169, %p170
      %p172 = scmp.ne.s32.totalorder %s163, %s164
      %p173 = scmp.eq.s32.totalorder %s27, 0
      %p174 = por %p172, %p173
      %p175 = scmp.ne.s32.totalorder %s163, %s164
      %p176 = scmp.eq.s32.totalorder %s28, 1
      %p177 = por %p175, %p176
      %p179 = scmp.ne.s32.totalorder %s164, %s178
      %p180 = scmp.eq.s32.totalorder %s28, 0
      %p181 = por %p179, %p180
      %s183 = sadd.s32 %s182, 1
      %p186 = scmp.eq.s32.totalorder %s22, 1
      %p187 = scmp.ne.s32.totalorder %s182, %s184
      %p188 = scmp.eq.s32.totalorder %s22, 0
      %p189 = por %p187, %p188
      %p190 = scmp.ne.s32.totalorder %s182, %s184
      %p191 = scmp.eq.s32.totalorder %s27, 1
      %p192 = por %p190, %p191
      %p193 = scmp.ne.s32.totalorder %s184, %s185
      %p194 = scmp.eq.s32.totalorder %s27, 0
      %p195 = por %p193, %p194
      %p196 = scmp.ne.s32.totalorder %s184, %s185
      %p197 = scmp.eq.s32.totalorder %s28, 1
      %p198 = por %p196, %p197
      %p200 = scmp.ne.s32.totalorder %s185, %s199
      %p201 = scmp.eq.s32.totalorder %s28, 0
      %p202 = por %p200, %p201
      %s204 = sadd.s32 %s203, 1
      %p207 = scmp.eq.s32.totalorder %s22, 1
      %p208 = scmp.ne.s32.totalorder %s203, %s205
      %p209 = scmp.eq.s32.totalorder %s22, 0
      %p210 = por %p208, %p209
      %p211 = scmp.ne.s32.totalorder %s203, %s205
      %p212 = scmp.eq.s32.totalorder %s27, 1
      %p213 = por %p211, %p212
      %p214 = scmp.ne.s32.totalorder %s205, %s206
      %p215 = scmp.eq.s32.totalorder %s27, 0
      %p216 = por %p214, %p215
      %p217 = scmp.ne.s32.totalorder %s205, %s206
      %p218 = scmp.eq.s32.totalorder %s28, 1
      %p219 = por %p217, %p218
      %p221 = scmp.ne.s32.totalorder %s206, %s220
      %p222 = scmp.eq.s32.totalorder %s28, 0
      %p223 = por %p221, %p222
      %s225 = sadd.s32 %s224, 1
      %p228 = scmp.eq.s32.totalorder %s22, 1
      %p229 = scmp.ne.s32.totalorder %s224, %s226
      %p230 = scmp.eq.s32.totalorder %s22, 0
      %p231 = por %p229, %p230
      %p232 = scmp.ne.s32.totalorder %s224, %s226
      %p233 = scmp.eq.s32.totalorder %s27, 1
      %p234 = por %p232, %p233
      %p235 = scmp.ne.s32.totalorder %s226, %s227
      %p236 = scmp.eq.s32.totalorder %s27, 0
      %p237 = por %p235, %p236
      %p238 = scmp.ne.s32.totalorder %s226, %s227
      %p239 = scmp.eq.s32.totalorder %s28, 1
      %p240 = por %p238, %p239
      %p242 = scmp.ne.s32.totalorder %s227, %s241
      %p243 = scmp.eq.s32.totalorder %s28, 0
      %p244 = por %p242, %p243
      %s246 = sadd.s32 %s245, 1
      %p249 = scmp.eq.s32.totalorder %s22, 1
      %p250 = scmp.ne.s32.totalorder %s245, %s247
      %p251 = scmp.eq.s32.totalorder %s22, 0
      %p252 = por %p250, %p251
      %p253 = scmp.ne.s32.totalorder %s245, %s247
      %p254 = scmp.eq.s32.totalorder %s27, 1
      %p255 = por %p253, %p254
      %p256 = scmp.ne.s32.totalorder %s247, %s248
      %p257 = scmp.eq.s32.totalorder %s27, 0
      %p258 = por %p256, %p257
      %p259 = scmp.ne.s32.totalorder %s247, %s248
      %p260 = scmp.eq.s32.totalorder %s28, 1
      %p261 = por %p259, %p260
      %p263 = scmp.ne.s32.totalorder %s248, %s262
      %p264 = scmp.eq.s32.totalorder %s28, 0
      %p265 = por %p263, %p264
      %s267 = sadd.s32 %s266, 1
      %p270 = scmp.eq.s32.totalorder %s22, 1
      %p271 = scmp.ne.s32.totalorder %s266, %s268
      %p272 = scmp.eq.s32.totalorder %s22, 0
      %p273 = por %p271, %p272
      %p274 = scmp.ne.s32.totalorder %s266, %s268
      %p275 = scmp.eq.s32.totalorder %s27, 1
      %p276 = por %p274, %p275
      %p277 = scmp.ne.s32.totalorder %s268, %s269
      %p278 = scmp.eq.s32.totalorder %s27, 0
      %p279 = por %p277, %p278
      %p280 = scmp.ne.s32.totalorder %s268, %s269
      %p281 = scmp.eq.s32.totalorder %s28, 1
      %p282 = por %p280, %p281
      %p284 = scmp.ne.s32.totalorder %s269, %s283
      %p285 = scmp.eq.s32.totalorder %s28, 0
      %p286 = por %p284, %p285
      %s288 = sadd.s32 %s287, 1
      %p291 = scmp.eq.s32.totalorder %s22, 1
      %p292 = scmp.ne.s32.totalorder %s287, %s289
      %p293 = scmp.eq.s32.totalorder %s22, 0
      %p294 = por %p292, %p293
      %p295 = scmp.ne.s32.totalorder %s287, %s289
      %p296 = scmp.eq.s32.totalorder %s27, 1
      %p297 = por %p295, %p296
      %p298 = scmp.ne.s32.totalorder %s289, %s290
      %p299 = scmp.eq.s32.totalorder %s27, 0
      %p300 = por %p298, %p299
      %p301 = scmp.ne.s32.totalorder %s289, %s290
      %p302 = scmp.eq.s32.totalorder %s28, 1
      %p303 = por %p301, %p302
      %p305 = scmp.ne.s32.totalorder %s290, %s304
      %p306 = scmp.eq.s32.totalorder %s28, 0
      %p307 = por %p305, %p306
      %s308 = ssub.s32 %s22, %s29
      %p309 = scmp.eq.s32.totalorder %s308, 0
      %s311 = sadd.s32 %s310, 1
      %s312 = scalar_select %p309, %s310, %s311
      %p315 = pneg %p309
      %p316 = scmp.eq.s32.totalorder %s22, 1
      %p317 = por %p315, %p316
      %p318 = scmp.ne.s32.totalorder %s310, %s313
      %p319 = scmp.eq.s32.totalorder %s22, 0
      %p320 = por %p318, %p319
      %p321 = scmp.ne.s32.totalorder %s310, %s313
      %p322 = scmp.eq.s32.totalorder %s27, 1
      %p323 = por %p321, %p322
      %p324 = scmp.ne.s32.totalorder %s313, %s314
      %p325 = scmp.eq.s32.totalorder %s27, 0
      %p326 = por %p324, %p325
      %p327 = scmp.ne.s32.totalorder %s313, %s314
      %p328 = scmp.eq.s32.totalorder %s28, 1
      %p329 = por %p327, %p328
      %p331 = scmp.ne.s32.totalorder %s314, %s330
      %p332 = scmp.eq.s32.totalorder %s28, 0
      %p333 = por %p331, %p332
      %p334 = scmp.le.s32.totalorder 1, %s22
      %p335 = scmp.lt.s32.totalorder %s22, 3
      %p336 = pnand %p334, %p335
      %p337 = pneg %p336
      // Predicated region
      $region9: #{tpu_custom_call.1} parent=5 // pred_check
        _
      $region10: #{tpu_custom_call.1} parent=5 // pred_check_branch
        %339 = sbr.rel (%p336) target = $region12
      $region11: #{tpu_custom_call.1} parent=5 // pred_region
        %s340 = ssub.s32 %s22, 1
        // Predicated region
        $region13: #{tpu_custom_call.1} parent=11 // pred_check
          %p341 = pneg %p69
        $region14: #{tpu_custom_call.1} parent=11 // pred_check_branch
          %343 = sbr.rel (%p341) target = $region16
        $region15: #{tpu_custom_call.1} parent=11 // pred_region
          _
        $region16: #{tpu_custom_call.1} parent=11 // pred_fallthru
          _
        // Predicated region
        $region17: #{tpu_custom_call.1} parent=11 // pred_check
          %p344 = pneg %p90
        $region18: #{tpu_custom_call.1} parent=11 // pred_check_branch
          %346 = sbr.rel (%p344) target = $region20
        $region19: #{tpu_custom_call.1} parent=11 // pred_region
          _
        $region20: #{tpu_custom_call.1} parent=11 // pred_fallthru
          _
        // Predicated region
        $region21: #{tpu_custom_call.1} parent=11 // pred_check
          %p347 = pneg %p111
        $region22: #{tpu_custom_call.1} parent=11 // pred_check_branch
          %349 = sbr.rel (%p347) target = $region24
        $region23: #{tpu_custom_call.1} parent=11 // pred_region
          _
        $region24: #{tpu_custom_call.1} parent=11 // pred_fallthru
          _
        // Predicated region
        $region25: #{tpu_custom_call.1} parent=11 // pred_check
          %p350 = pneg %p132
        $region26: #{tpu_custom_call.1} parent=11 // pred_check_branch
          %352 = sbr.rel (%p350) target = $region28
        $region27: #{tpu_custom_call.1} parent=11 // pred_region
          _
        $region28: #{tpu_custom_call.1} parent=11 // pred_fallthru
          _
        // Predicated region
        $region29: #{tpu_custom_call.1} parent=11 // pred_check
          %p353 = pneg %p153
        $region30: #{tpu_custom_call.1} parent=11 // pred_check_branch
          %355 = sbr.rel (%p353) target = $region32
        $region31: #{tpu_custom_call.1} parent=11 // pred_region
          _
        $region32: #{tpu_custom_call.1} parent=11 // pred_fallthru
          _
        // Predicated region
        $region33: #{tpu_custom_call.1} parent=11 // pred_check
          %p356 = pneg %p174
        $region34: #{tpu_custom_call.1} parent=11 // pred_check_branch
          %358 = sbr.rel (%p356) target = $region36
        $region35: #{tpu_custom_call.1} parent=11 // pred_region
          _
        $region36: #{tpu_custom_call.1} parent=11 // pred_fallthru
          _
        // Predicated region
        $region37: #{tpu_custom_call.1} parent=11 // pred_check
          %p359 = pneg %p195
        $region38: #{tpu_custom_call.1} parent=11 // pred_check_branch
          %361 = sbr.rel (%p359) target = $region40
        $region39: #{tpu_custom_call.1} parent=11 // pred_region
          _
        $region40: #{tpu_custom_call.1} parent=11 // pred_fallthru
          _
        // Predicated region
        $region41: #{tpu_custom_call.1} parent=11 // pred_check
          %p362 = pneg %p216
        $region42: #{tpu_custom_call.1} parent=11 // pred_check_branch
          %364 = sbr.rel (%p362) target = $region44
        $region43: #{tpu_custom_call.1} parent=11 // pred_region
          _
        $region44: #{tpu_custom_call.1} parent=11 // pred_fallthru
          _
        // Predicated region
        $region45: #{tpu_custom_call.1} parent=11 // pred_check
          %p365 = pneg %p237
        $region46: #{tpu_custom_call.1} parent=11 // pred_check_branch
          %367 = sbr.rel (%p365) target = $region48
        $region47: #{tpu_custom_call.1} parent=11 // pred_region
          _
        $region48: #{tpu_custom_call.1} parent=11 // pred_fallthru
          _
        // Predicated region
        $region49: #{tpu_custom_call.1} parent=11 // pred_check
          %p368 = pneg %p258
        $region50: #{tpu_custom_call.1} parent=11 // pred_check_branch
          %370 = sbr.rel (%p368) target = $region52
        $region51: #{tpu_custom_call.1} parent=11 // pred_region
          _
        $region52: #{tpu_custom_call.1} parent=11 // pred_fallthru
          _
        // Predicated region
        $region53: #{tpu_custom_call.1} parent=11 // pred_check
          %p371 = pneg %p279
        $region54: #{tpu_custom_call.1} parent=11 // pred_check_branch
          %373 = sbr.rel (%p371) target = $region56
        $region55: #{tpu_custom_call.1} parent=11 // pred_region
          _
        $region56: #{tpu_custom_call.1} parent=11 // pred_fallthru
          _
        // Predicated region
        $region57: #{tpu_custom_call.1} parent=11 // pred_check
          %p374 = pneg %p300
        $region58: #{tpu_custom_call.1} parent=11 // pred_check_branch
          %376 = sbr.rel (%p374) target = $region60
        $region59: #{tpu_custom_call.1} parent=11 // pred_region
          _
        $region60: #{tpu_custom_call.1} parent=11 // pred_fallthru
          _
      $region12: #{tpu_custom_call.1} parent=5 // pred_fallthru
        _
      %p377 = scmp.lt.s32.totalorder %s22, 2
      // Predicated region
      $region61: #{tpu_custom_call.1} parent=5 // pred_check
        %p378 = pneg %p377
      $region62: #{tpu_custom_call.1} parent=5 // pred_check_branch
        %380 = sbr.rel (%p378) target = $region64
      $region63: #{tpu_custom_call.1} parent=5 // pred_region
        // Predicated region
        $region65: #{tpu_custom_call.1} parent=63 // pred_check
          %p381 = pneg %p42
        $region66: #{tpu_custom_call.1} parent=63 // pred_check_branch
          %383 = sbr.rel (%p381) target = $region68
        $region67: #{tpu_custom_call.1} parent=63 // pred_region
          %p384 = scmp.lt.s32.totalorder %s22, 1
          %s385 = scalar_select %p384, %s22, 1
          %s386 = smul.addr %s385, 2
          %s387 = smul.addr %s386, 8
          %s388 = scalar_lea.vmem %s0, %s387
        $region68: #{tpu_custom_call.1} parent=63 // pred_fallthru
          _
      $region64: #{tpu_custom_call.1} parent=5 // pred_fallthru
        _
      %p389 = scmp.le.s32.totalorder 1, %s22
      %p390 = scmp.lt.s32.totalorder %s22, 3
      %p391 = pnand %p389, %p390
      %p392 = pneg %p391
      // Predicated region
      $region69: #{tpu_custom_call.1} parent=5 // pred_check
        _
      $region70: #{tpu_custom_call.1} parent=5 // pred_check_branch
        %394 = sbr.rel (%p391) target = $region72
      $region71: #{tpu_custom_call.1} parent=5 // pred_region
        %s395 = ssub.s32 %s22, 1
        %p396 = scmp.lt.s32.totalorder %s27, 1
        %s397 = scalar_select %p396, %s27, 1
        %s398 = smul.addr %s397, 2
        %s399 = smul.addr %s398, 8
        %s400 = scalar_lea.vmem %s0, %s399
        %p401 = pneg %p48
        %p402 = pneg %p45
        %p403 = pneg %p69
        %p404 = pneg %p66
        %p405 = pneg %p90
        %p406 = pneg %p87
        %p407 = pneg %p111
        %p408 = pneg %p108
        %p409 = pneg %p132
        %p410 = pneg %p129
        %p411 = pneg %p153
        %p412 = pneg %p150
        %p413 = pneg %p174
        %p414 = pneg %p171
        %p415 = pneg %p195
        %p416 = pneg %p192
        %p417 = pneg %p216
        %p418 = pneg %p213
        %p419 = pneg %p237
        %p420 = pneg %p234
        %p421 = pneg %p258
        %p422 = pneg %p255
        %p423 = pneg %p279
        %p424 = pneg %p276
        %p425 = pneg %p300
        %p426 = pneg %p297
        %p427 = pneg %p326
        %p428 = pneg %p323
        %s429 = sand.u32 %s313, 1
        %s430 = scalar_lea.sflag [#allocation4], %s429
        %s431 = sand.u32 %s313, 1
        %s432 = smul.addr %s431, 16
        %s433 = scalar_lea.vmem [#allocation3], %s432
        %p434 = scmp.lt.s32.totalorder %s27, 1
        %s435 = scalar_select %p434, %s27, 1
        %s436 = smul.addr %s435, 2
        %s437 = smul.addr %s436, 8
        %s438 = scalar_lea.vmem %s0, %s437
        %v440 = vld [vmem:[%s438] sm:$0xff]
        %v441 = vld [vmem:[%s438 + $0x8] sm:$0xff]
        %v442 = vld [vmem:[%s1] sm:$0x1]
        %v443 = vld [vmem:[%s2] sm:$0x1]
        %vm444 = vcmask 261120
        %v445 = vsel %vm444, %v440, 0.0
        %446 = vadd.xlane.f32.xlu0 %v445
        %v447 = vpop.xlane.xlu0 %446
        %v448 = vsel %vm444, %v441, 0.0
        %449 = vadd.xlane.f32.xlu0 %v448
        %v450 = vpop.xlane.xlu0 %449
        %v451 = vrcp.pop 32.0
        %v452 = vmul.f32 %v447, %v451
        %v453 = vmul.f32 %v450, %v451
        %v454 = vsub.f32 %v440, %v452
        %v455 = vsub.f32 %v441, %v453
        %v456 = vmul.f32 %v454, %v454
        %v457 = vmul.f32 %v455, %v455
        %v458 = vsel %vm444, %v456, 0.0
        %459 = vadd.xlane.f32.xlu0 %v458
        %v460 = vpop.xlane.xlu0 %459
        %v461 = vsel %vm444, %v457, 0.0
        %462 = vadd.xlane.f32.xlu0 %v461
        %v463 = vpop.xlane.xlu0 %462
        %v464 = vmul.f32 %v460, %v451
        %v465 = vmul.f32 %v463, %v451
        %v466 = vadd.f32 %v464, 1e-06
        %v467 = vadd.f32 %v465, 1e-06
        %v468 = vrsqrt.pop %v466
        %v469 = vrsqrt.pop %v467
        %v470 = vmul.f32 %v454, %v468
        %v471 = vmul.f32 %v455, %v469
        %v473 = vlaneseq
        %v474 = vshrl.u32 %v473, 7
        %v475 = vsub.s32 0, %v474
        %v476 = vrot.slane %v442, %v475
        %v478 = vmul.f32 %v470, %v476
        %v479 = vmul.f32 %v471, %v476
        %v481 = vlaneseq
        %v482 = vshrl.u32 %v481, 7
        %v483 = vsub.s32 0, %v482
        %v484 = vrot.slane %v443, %v483
        %v486 = vadd.f32 %v478, %v484
        %v487 = vadd.f32 %v479, %v484
        %v488 = vpack.c.bf16 %v487, %v486
        %v489 = vld [vmem:[%s3] sm:$0xf]
        %v490 = vld [vmem:[%s3 + $0x4] sm:$0xf]
        %v491 = vld [vmem:[%s3 + $0x8] sm:$0xf]
        %v492 = vld [vmem:[%s3 + $0xc] sm:$0xf]
        %v493 = vld [vmem:[%s4] sm:$0x1]
        %v495 = vlaneseq
        %v496 = vshrl.u32 %v495, 7
        %v497 = vsub.s32 0, %v496
        %v498 = vrot.slane %v493, %v497
        %v504 = vunpack.c.l.b16 %v489
        %v505 = vunpack.c.l.b16 %v490
        %v506 = vunpack.c.l.b16 %v491
        %v507 = vunpack.c.l.b16 %v492
        %v508 = vpack.c.b16 %v505, %v504
        %v509 = vpack.c.b16 %v507, %v506
        %v513 = vsel %vm444, %v488, 0
        %515 = vmatprep.subr.bf16.mxu0 0
        %516 = vmatpush1.bf16.msra.mxu0 %v508
        %517 = vmatprep.subr.bf16.mxu0 0
        %518 = vmatpush1.bf16.msra.mxu0 %v509
        %519 = vmatprep.subr.bf16.mxu0 0
        %520 = vmatpush1.bf16.msra.mxu0 0
        %521 = vmatprep.subr.bf16.mxu0 0
        %522 = vmatpush1.bf16.msra.mxu0 0
        %523 = vmatprep.subr.bf16.mxu0 0
        %524 = vmatpush1.bf16.msra.mxu0 0
        %525 = vmatprep.subr.bf16.mxu0 0
        %526 = vmatpush1.bf16.msra.mxu0 0
        %527 = vmatprep.subr.bf16.mxu0 0
        %528 = vmatpush1.bf16.msra.mxu0 0
        %529 = vmatprep.subr.bf16.mxu0 0
        %530 = vmatpush1.bf16.msra.mxu0 0
        %531 = vmatprep.subr.bf16.mxu0 0
        %532 = vmatpush1.bf16.msra.mxu0 0
        %533 = vmatprep.subr.bf16.mxu0 0
        %534 = vmatpush1.bf16.msra.mxu0 0
        %535 = vmatprep.subr.bf16.mxu0 0
        %536 = vmatpush1.bf16.msra.mxu0 0
        %537 = vmatprep.subr.bf16.mxu0 0
        %538 = vmatpush1.bf16.msra.mxu0 0
        %539 = vmatprep.subr.bf16.mxu0 0
        %540 = vmatpush1.bf16.msra.mxu0 0
        %541 = vmatprep.subr.bf16.mxu0 0
        %542 = vmatpush1.bf16.msra.mxu0 0
        %543 = vmatprep.subr.bf16.mxu0 0
        %544 = vmatpush1.bf16.msra.mxu0 0
        %545 = vmatprep.subr.bf16.mxu0 0
        %546 = vmatpush1.bf16.msra.mxu0 0
        %547 = vmatprep.mubr.bf16.mxu0 0
        %548 = vmatmul.mubr.bf16.gmra.mrb[0].mxu0 %v513
        %v549 = vpop.f32.mrb[0].mxu0
        %v550 = vadd.f32 %v498, %v549
        %v551 = vpop.f32.mrb[0].mxu0
        %v552 = vpop.f32.mrb[0].mxu0
        %v553 = vadd.f32 %v498, %v552
        %v554 = vpop.f32.mrb[0].mxu0
        %555 = vdwg.mxu0
        %s556 = scalar_lea.vmem %s3, 64
        %v557 = vld [vmem:[%s556] sm:$0xf]
        %v558 = vld [vmem:[%s556 + $0x4] sm:$0xf]
        %v559 = vld [vmem:[%s556 + $0x8] sm:$0xf]
        %v560 = vld [vmem:[%s556 + $0xc] sm:$0xf]
        %s561 = scalar_lea.vmem %s4, 4
        %v562 = vld [vmem:[%s561] sm:$0x1]
        %v564 = vlaneseq
        %v565 = vshrl.u32 %v564, 7
        %v566 = vsub.s32 0, %v565
        %v567 = vrot.slane %v562, %v566
        %v573 = vunpack.c.l.b16 %v557
        %v574 = vunpack.c.l.b16 %v558
        %v575 = vunpack.c.l.b16 %v559
        %v576 = vunpack.c.l.b16 %v560
        %v577 = vpack.c.b16 %v574, %v573
        %v578 = vpack.c.b16 %v576, %v575
        %581 = vmatprep.subr.bf16.mxu0 0
        %582 = vmatpush1.bf16.msra.mxu0 %v577
        %583 = vmatprep.subr.bf16.mxu0 0
        %584 = vmatpush1.bf16.msra.mxu0 %v578
        %585 = vmatprep.subr.bf16.mxu0 0
        %586 = vmatpush1.bf16.msra.mxu0 0
        %587 = vmatprep.subr.bf16.mxu0 0
        %588 = vmatpush1.bf16.msra.mxu0 0
        %589 = vmatprep.subr.bf16.mxu0 0
        %590 = vmatpush1.bf16.msra.mxu0 0
        %591 = vmatprep.subr.bf16.mxu0 0
        %592 = vmatpush1.bf16.msra.mxu0 0
        %593 = vmatprep.subr.bf16.mxu0 0
        %594 = vmatpush1.bf16.msra.mxu0 0
        %595 = vmatprep.subr.bf16.mxu0 0
        %596 = vmatpush1.bf16.msra.mxu0 0
        %597 = vmatprep.subr.bf16.mxu0 0
        %598 = vmatpush1.bf16.msra.mxu0 0
        %599 = vmatprep.subr.bf16.mxu0 0
        %600 = vmatpush1.bf16.msra.mxu0 0
        %601 = vmatprep.subr.bf16.mxu0 0
        %602 = vmatpush1.bf16.msra.mxu0 0
        %603 = vmatprep.subr.bf16.mxu0 0
        %604 = vmatpush1.bf16.msra.mxu0 0
        %605 = vmatprep.subr.bf16.mxu0 0
        %606 = vmatpush1.bf16.msra.mxu0 0
        %607 = vmatprep.subr.bf16.mxu0 0
        %608 = vmatpush1.bf16.msra.mxu0 0
        %609 = vmatprep.subr.bf16.mxu0 0
        %610 = vmatpush1.bf16.msra.mxu0 0
        %611 = vmatprep.subr.bf16.mxu0 0
        %612 = vmatpush1.bf16.msra.mxu0 0
        %613 = vmatprep.mubr.bf16.mxu0 0
        %614 = vmatmul.mubr.bf16.gmra.mrb[0].mxu0 %v513
        %v615 = vpop.f32.mrb[0].mxu0
        %v616 = vadd.f32 %v567, %v615
        %v617 = vpop.f32.mrb[0].mxu0
        %v618 = vpop.f32.mrb[0].mxu0
        %v619 = vadd.f32 %v567, %v618
        %v620 = vpop.f32.mrb[0].mxu0
        %621 = vdwg.mxu0
        %s622 = scalar_lea.vmem %s3, 128
        %v623 = vld [vmem:[%s622] sm:$0xf]
        %v624 = vld [vmem:[%s622 + $0x4] sm:$0xf]
        %v625 = vld [vmem:[%s622 + $0x8] sm:$0xf]
        %v626 = vld [vmem:[%s622 + $0xc] sm:$0xf]
        %s627 = scalar_lea.vmem %s4, 8
        %v628 = vld [vmem:[%s627] sm:$0x1]
        %v630 = vlaneseq
        %v631 = vshrl.u32 %v630, 7
        %v632 = vsub.s32 0, %v631
        %v633 = vrot.slane %v628, %v632
        %v639 = vunpack.c.l.b16 %v623
        %v640 = vunpack.c.l.b16 %v624
        %v641 = vunpack.c.l.b16 %v625
        %v642 = vunpack.c.l.b16 %v626
        %v643 = vpack.c.b16 %v640, %v639
        %v644 = vpack.c.b16 %v642, %v641
        %647 = vmatprep.subr.bf16.mxu0 0
        %648 = vmatpush1.bf16.msra.mxu0 %v643
        %649 = vmatprep.subr.bf16.mxu0 0
        %650 = vmatpush1.bf16.msra.mxu0 %v644
        %651 = vmatprep.subr.bf16.mxu0 0
        %652 = vmatpush1.bf16.msra.mxu0 0
        %653 = vmatprep.subr.bf16.mxu0 0
        %654 = vmatpush1.bf16.msra.mxu0 0
        %655 = vmatprep.subr.bf16.mxu0 0
        %656 = vmatpush1.bf16.msra.mxu0 0
        %657 = vmatprep.subr.bf16.mxu0 0
        %658 = vmatpush1.bf16.msra.mxu0 0
        %659 = vmatprep.subr.bf16.mxu0 0
        %660 = vmatpush1.bf16.msra.mxu0 0
        %661 = vmatprep.subr.bf16.mxu0 0
        %662 = vmatpush1.bf16.msra.mxu0 0
        %663 = vmatprep.subr.bf16.mxu0 0
        %664 = vmatpush1.bf16.msra.mxu0 0
        %665 = vmatprep.subr.bf16.mxu0 0
        %666 = vmatpush1.bf16.msra.mxu0 0
        %667 = vmatprep.subr.bf16.mxu0 0
        %668 = vmatpush1.bf16.msra.mxu0 0
        %669 = vmatprep.subr.bf16.mxu0 0
        %670 = vmatpush1.bf16.msra.mxu0 0
        %671 = vmatprep.subr.bf16.mxu0 0
        %672 = vmatpush1.bf16.msra.mxu0 0
        %673 = vmatprep.subr.bf16.mxu0 0
        %674 = vmatpush1.bf16.msra.mxu0 0
        %675 = vmatprep.subr.bf16.mxu0 0
        %676 = vmatpush1.bf16.msra.mxu0 0
        %677 = vmatprep.subr.bf16.mxu0 0
        %678 = vmatpush1.bf16.msra.mxu0 0
        %679 = vmatprep.mubr.bf16.mxu0 0
        %680 = vmatmul.mubr.bf16.gmra.mrb[0].mxu0 %v513
        %v681 = vpop.f32.mrb[0].mxu0
        %v682 = vadd.f32 %v633, %v681
        %v683 = vpop.f32.mrb[0].mxu0
        %v684 = vpop.f32.mrb[0].mxu0
        %v685 = vadd.f32 %v633, %v684
        %v686 = vpop.f32.mrb[0].mxu0
        %687 = vdwg.mxu0
        %v688 = vpack.c.bf16 %v553, %v550
        %v689 = vpack.c.bf16 %v619, %v616
        %vm690 = vcmask 64512
        %v692 = vsel %vm690, %v688, 0
        %v695 = vsel %vm690, %v689, 0
        %697 = vmatprep.subr.bf16.mxu0 0
        %698 = vmatpush1.bf16.xpose.msra.mxu0 %v695
        %699 = vmatprep.subr.bf16.mxu0 0
        %700 = vmatpush1.bf16.xpose.msra.mxu0 0
        %701 = vmatprep.subr.bf16.mxu0 0
        %702 = vmatpush1.bf16.xpose.msra.mxu0 0
        %703 = vmatprep.subr.bf16.mxu0 0
        %704 = vmatpush1.bf16.xpose.msra.mxu0 0
        %705 = vmatprep.subr.bf16.mxu0 0
        %706 = vmatpush1.bf16.xpose.msra.mxu0 0
        %707 = vmatprep.subr.bf16.mxu0 0
        %708 = vmatpush1.bf16.xpose.msra.mxu0 0
        %709 = vmatprep.subr.bf16.mxu0 0
        %710 = vmatpush1.bf16.xpose.msra.mxu0 0
        %711 = vmatprep.subr.bf16.mxu0 0
        %712 = vmatpush1.bf16.xpose.msra.mxu0 0
        %713 = vmatprep.subr.bf16.mxu0 0
        %714 = vmatpush1.bf16.xpose.msra.mxu0 0
        %715 = vmatprep.subr.bf16.mxu0 0
        %716 = vmatpush1.bf16.xpose.msra.mxu0 0
        %717 = vmatprep.subr.bf16.mxu0 0
        %718 = vmatpush1.bf16.xpose.msra.mxu0 0
        %719 = vmatprep.subr.bf16.mxu0 0
        %720 = vmatpush1.bf16.xpose.msra.mxu0 0
        %721 = vmatprep.subr.bf16.mxu0 0
        %722 = vmatpush1.bf16.xpose.msra.mxu0 0
        %723 = vmatprep.subr.bf16.mxu0 0
        %724 = vmatpush1.bf16.xpose.msra.mxu0 0
        %725 = vmatprep.subr.bf16.mxu0 0
        %726 = vmatpush1.bf16.xpose.msra.mxu0 0
        %727 = vmatprep.subr.bf16.mxu0 0
        %728 = vmatpush1.bf16.xpose.msra.mxu0 0
        %729 = vmatprep.mubr.bf16.mxu0 0
        %730 = vmatmul.mubr.bf16.gmra.mrb[0].mxu0 %v692
        %v731 = vpop.f32.mrb[0].mxu0
        %v732 = vadd.f32 0.0, %v731
        %v733 = vpop.f32.mrb[0].mxu0
        %v734 = vpop.f32.mrb[0].mxu0
        %v735 = vadd.f32 0.0, %v734
        %v736 = vpop.f32.mrb[0].mxu0
        %737 = vdwg.mxu0
        %vm738 = vcmask 130048
        %v739 = vsel %vm738, %v732, -inf
        %740 = vmax.xlane.f32.xlu0 %v739
        %v741 = vpop.xlane.xlu0 %740
        %v742 = vsel %vm738, %v735, -inf
        %743 = vmax.xlane.f32.xlu0 %v742
        %v744 = vpop.xlane.xlu0 %743
        %v745 = vsub.f32 %v732, %v741
        %v746 = vsub.f32 %v735, %v744
        %v747 = vmul.f32 %v745, 1.442695
        %v748 = vpow.pop %v747
        %v749 = vmul.f32 %v746, 1.442695
        %v750 = vpow.pop %v749
        %v751 = vsel %vm738, %v748, 0.0
        %752 = vadd.xlane.f32.xlu0 %v751
        %v753 = vpop.xlane.xlu0 %752
        %v754 = vsel %vm738, %v750, 0.0
        %755 = vadd.xlane.f32.xlu0 %v754
        %v756 = vpop.xlane.xlu0 %755
        %v757 = vrcp.pop %v753
        %v758 = vrcp.pop %v756
        %v759 = vmul.f32 %v748, %v757
        %v760 = vmul.f32 %v750, %v758
        %v761 = vpack.c.bf16 %v760, %v759
        %v762 = vpack.c.bf16 %v685, %v682
        %v764 = vsel %vm738, %v761, 0
        %766 = vmatprep.subr.bf16.mxu0 0
        %767 = vmatpush1.bf16.msra.mxu0 %v762
        %768 = vmatprep.subr.bf16.mxu0 0
        %769 = vmatpush1.bf16.msra.mxu0 0
        %770 = vmatprep.subr.bf16.mxu0 0
        %771 = vmatpush1.bf16.msra.mxu0 0
        %772 = vmatprep.subr.bf16.mxu0 0
        %773 = vmatpush1.bf16.msra.mxu0 0
        %774 = vmatprep.subr.bf16.mxu0 0
        %775 = vmatpush1.bf16.msra.mxu0 0
        %776 = vmatprep.subr.bf16.mxu0 0
        %777 = vmatpush1.bf16.msra.mxu0 0
        %778 = vmatprep.subr.bf16.mxu0 0
        %779 = vmatpush1.bf16.msra.mxu0 0
        %780 = vmatprep.subr.bf16.mxu0 0
        %781 = vmatpush1.bf16.msra.mxu0 0
        %782 = vmatprep.subr.bf16.mxu0 0
        %783 = vmatpush1.bf16.msra.mxu0 0
        %784 = vmatprep.subr.bf16.mxu0 0
        %785 = vmatpush1.bf16.msra.mxu0 0
        %786 = vmatprep.subr.bf16.mxu0 0
        %787 = vmatpush1.bf16.msra.mxu0 0
        %788 = vmatprep.subr.bf16.mxu0 0
        %789 = vmatpush1.bf16.msra.mxu0 0
        %790 = vmatprep.subr.bf16.mxu0 0
        %791 = vmatpush1.bf16.msra.mxu0 0
        %792 = vmatprep.subr.bf16.mxu0 0
        %793 = vmatpush1.bf16.msra.mxu0 0
        %794 = vmatprep.subr.bf16.mxu0 0
        %795 = vmatpush1.bf16.msra.mxu0 0
        %796 = vmatprep.subr.bf16.mxu0 0
        %797 = vmatpush1.bf16.msra.mxu0 0
        %798 = vmatprep.mubr.bf16.mxu0 0
        %799 = vmatmul.mubr.bf16.gmra.mrb[0].mxu0 %v764
        %v800 = vpop.f32.mrb[0].mxu0
        %v801 = vadd.f32 0.0, %v800
        %v802 = vpop.f32.mrb[0].mxu0
        %v803 = vpop.f32.mrb[0].mxu0
        %v804 = vadd.f32 0.0, %v803
        %v805 = vpop.f32.mrb[0].mxu0
        %806 = vdwg.mxu0
        %807 = vst.msk [vmem:[#allocation2] sm:$0xff] %vm690, %v801
        %808 = vst.msk [vmem:[#allocation2 + $0x8] sm:$0xff] %vm690, %v804
        %s809 = scalar_lea.vmem %s3, 16
        %v810 = vld [vmem:[%s809] sm:$0xf]
        %v811 = vld [vmem:[%s809 + $0x4] sm:$0xf]
        %v812 = vld [vmem:[%s809 + $0x8] sm:$0xf]
        %v813 = vld [vmem:[%s809 + $0xc] sm:$0xf]
        %s814 = scalar_lea.vmem %s4, 1
        %v815 = vld [vmem:[%s814] sm:$0x1]
        %v817 = vlaneseq
        %v818 = vshrl.u32 %v817, 7
        %v819 = vsub.s32 0, %v818
        %v820 = vrot.slane %v815, %v819
        %v826 = vunpack.c.l.b16 %v810
        %v827 = vunpack.c.l.b16 %v811
        %v828 = vunpack.c.l.b16 %v812
        %v829 = vunpack.c.l.b16 %v813
        %v830 = vpack.c.b16 %v827, %v826
        %v831 = vpack.c.b16 %v829, %v828
        %834 = vmatprep.subr.bf16.mxu0 0
        %835 = vmatpush1.bf16.msra.mxu0 %v830
        %836 = vmatprep.subr.bf16.mxu0 0
        %837 = vmatpush1.bf16.msra.mxu0 %v831
        %838 = vmatprep.subr.bf16.mxu0 0
        %839 = vmatpush1.bf16.msra.mxu0 0
        %840 = vmatprep.subr.bf16.mxu0 0
        %841 = vmatpush1.bf16.msra.mxu0 0
        %842 = vmatprep.subr.bf16.mxu0 0
        %843 = vmatpush1.bf16.msra.mxu0 0
        %844 = vmatprep.subr.bf16.mxu0 0
        %845 = vmatpush1.bf16.msra.mxu0 0
        %846 = vmatprep.subr.bf16.mxu0 0
        %847 = vmatpush1.bf16.msra.mxu0 0
        %848 = vmatprep.subr.bf16.mxu0 0
        %849 = vmatpush1.bf16.msra.mxu0 0
        %850 = vmatprep.subr.bf16.mxu0 0
        %851 = vmatpush1.bf16.msra.mxu0 0
        %852 = vmatprep.subr.bf16.mxu0 0
        %853 = vmatpush1.bf16.msra.mxu0 0
        %854 = vmatprep.subr.bf16.mxu0 0
        %855 = vmatpush1.bf16.msra.mxu0 0
        %856 = vmatprep.subr.bf16.mxu0 0
        %857 = vmatpush1.bf16.msra.mxu0 0
        %858 = vmatprep.subr.bf16.mxu0 0
        %859 = vmatpush1.bf16.msra.mxu0 0
        %860 = vmatprep.subr.bf16.mxu0 0
        %861 = vmatpush1.bf16.msra.mxu0 0
        %862 = vmatprep.subr.bf16.mxu0 0
        %863 = vmatpush1.bf16.msra.mxu0 0
        %864 = vmatprep.subr.bf16.mxu0 0
        %865 = vmatpush1.bf16.msra.mxu0 0
        %866 = vmatprep.mubr.bf16.mxu0 0
        %867 = vmatmul.mubr.bf16.gmra.mrb[0].mxu0 %v513
        %v868 = vpop.f32.mrb[0].mxu0
        %v869 = vadd.f32 %v820, %v868
        %v870 = vpop.f32.mrb[0].mxu0
        %v871 = vpop.f32.mrb[0].mxu0
        %v872 = vadd.f32 %v820, %v871
        %v873 = vpop.f32.mrb[0].mxu0
        %874 = vdwg.mxu0
        %s875 = scalar_lea.vmem %s3, 80
        %v876 = vld [vmem:[%s875] sm:$0xf]
        %v877 = vld [vmem:[%s875 + $0x4] sm:$0xf]
        %v878 = vld [vmem:[%s875 + $0x8] sm:$0xf]
        %v879 = vld [vmem:[%s875 + $0xc] sm:$0xf]
        %s880 = scalar_lea.vmem %s4, 5
        %v881 = vld [vmem:[%s880] sm:$0x1]
        %v883 = vlaneseq
        %v884 = vshrl.u32 %v883, 7
        %v885 = vsub.s32 0, %v884
        %v886 = vrot.slane %v881, %v885
        %v892 = vunpack.c.l.b16 %v876
        %v893 = vunpack.c.l.b16 %v877
        %v894 = vunpack.c.l.b16 %v878
        %v895 = vunpack.c.l.b16 %v879
        %v896 = vpack.c.b16 %v893, %v892
        %v897 = vpack.c.b16 %v895, %v894
        %900 = vmatprep.subr.bf16.mxu0 0
        %901 = vmatpush1.bf16.msra.mxu0 %v896
        %902 = vmatprep.subr.bf16.mxu0 0
        %903 = vmatpush1.bf16.msra.mxu0 %v897
        %904 = vmatprep.subr.bf16.mxu0 0
        %905 = vmatpush1.bf16.msra.mxu0 0
        %906 = vmatprep.subr.bf16.mxu0 0
        %907 = vmatpush1.bf16.msra.mxu0 0
        %908 = vmatprep.subr.bf16.mxu0 0
        %909 = vmatpush1.bf16.msra.mxu0 0
        %910 = vmatprep.subr.bf16.mxu0 0
        %911 = vmatpush1.bf16.msra.mxu0 0
        %912 = vmatprep.subr.bf16.mxu0 0
        %913 = vmatpush1.bf16.msra.mxu0 0
        %914 = vmatprep.subr.bf16.mxu0 0
        %915 = vmatpush1.bf16.msra.mxu0 0
        %916 = vmatprep.subr.bf16.mxu0 0
        %917 = vmatpush1.bf16.msra.mxu0 0
        %918 = vmatprep.subr.bf16.mxu0 0
        %919 = vmatpush1.bf16.msra.mxu0 0
        %920 = vmatprep.subr.bf16.mxu0 0
        %921 = vmatpush1.bf16.msra.mxu0 0
        %922 = vmatprep.subr.bf16.mxu0 0
        %923 = vmatpush1.bf16.msra.mxu0 0
        %924 = vmatprep.subr.bf16.mxu0 0
        %925 = vmatpush1.bf16.msra.mxu0 0
        %926 = vmatprep.subr.bf16.mxu0 0
        %927 = vmatpush1.bf16.msra.mxu0 0
        %928 = vmatprep.subr.bf16.mxu0 0
        %929 = vmatpush1.bf16.msra.mxu0 0
        %930 = vmatprep.subr.bf16.mxu0 0
        %931 = vmatpush1.bf16.msra.mxu0 0
        %932 = vmatprep.mubr.bf16.mxu0 0
        %933 = vmatmul.mubr.bf16.gmra.mrb[0].mxu0 %v513
        %v934 = vpop.f32.mrb[0].mxu0
        %v935 = vadd.f32 %v886, %v934
        %v936 = vpop.f32.mrb[0].mxu0
        %v937 = vpop.f32.mrb[0].mxu0
        %v938 = vadd.f32 %v886, %v937
        %v939 = vpop.f32.mrb[0].mxu0
        %940 = vdwg.mxu0
        %s941 = scalar_lea.vmem %s3, 144
        %v942 = vld [vmem:[%s941] sm:$0xf]
        %v943 = vld [vmem:[%s941 + $0x4] sm:$0xf]
        %v944 = vld [vmem:[%s941 + $0x8] sm:$0xf]
        %v945 = vld [vmem:[%s941 + $0xc] sm:$0xf]
        %s946 = scalar_lea.vmem %s4, 9
        %v947 = vld [vmem:[%s946] sm:$0x1]
        %v949 = vlaneseq
        %v950 = vshrl.u32 %v949, 7
        %v951 = vsub.s32 0, %v950
        %v952 = vrot.slane %v947, %v951
        %v958 = vunpack.c.l.b16 %v942
        %v959 = vunpack.c.l.b16 %v943
        %v960 = vunpack.c.l.b16 %v944
        %v961 = vunpack.c.l.b16 %v945
        %v962 = vpack.c.b16 %v959, %v958
        %v963 = vpack.c.b16 %v961, %v960
        %966 = vmatprep.subr.bf16.mxu0 0
        %967 = vmatpush1.bf16.msra.mxu0 %v962
        %968 = vmatprep.subr.bf16.mxu0 0
        %969 = vmatpush1.bf16.msra.mxu0 %v963
        %970 = vmatprep.subr.bf16.mxu0 0
        %971 = vmatpush1.bf16.msra.mxu0 0
        %972 = vmatprep.subr.bf16.mxu0 0
        %973 = vmatpush1.bf16.msra.mxu0 0
        %974 = vmatprep.subr.bf16.mxu0 0
        %975 = vmatpush1.bf16.msra.mxu0 0
        %976 = vmatprep.subr.bf16.mxu0 0
        %977 = vmatpush1.bf16.msra.mxu0 0
        %978 = vmatprep.subr.bf16.mxu0 0
        %979 = vmatpush1.bf16.msra.mxu0 0
        %980 = vmatprep.subr.bf16.mxu0 0
        %981 = vmatpush1.bf16.msra.mxu0 0
        %982 = vmatprep.subr.bf16.mxu0 0
        %983 = vmatpush1.bf16.msra.mxu0 0
        %984 = vmatprep.subr.bf16.mxu0 0
        %985 = vmatpush1.bf16.msra.mxu0 0
        %986 = vmatprep.subr.bf16.mxu0 0
        %987 = vmatpush1.bf16.msra.mxu0 0
        %988 = vmatprep.subr.bf16.mxu0 0
        %989 = vmatpush1.bf16.msra.mxu0 0
        %990 = vmatprep.subr.bf16.mxu0 0
        %991 = vmatpush1.bf16.msra.mxu0 0
        %992 = vmatprep.subr.bf16.mxu0 0
        %993 = vmatpush1.bf16.msra.mxu0 0
        %994 = vmatprep.subr.bf16.mxu0 0
        %995 = vmatpush1.bf16.msra.mxu0 0
        %996 = vmatprep.subr.bf16.mxu0 0
        %997 = vmatpush1.bf16.msra.mxu0 0
        %998 = vmatprep.mubr.bf16.mxu0 0
        %999 = vmatmul.mubr.bf16.gmra.mrb[0].mxu0 %v513
        %v1000 = vpop.f32.mrb[0].mxu0
        %v1001 = vadd.f32 %v952, %v1000
        %v1002 = vpop.f32.mrb[0].mxu0
        %v1003 = vpop.f32.mrb[0].mxu0
        %v1004 = vadd.f32 %v952, %v1003
        %v1005 = vpop.f32.mrb[0].mxu0
        %1006 = vdwg.mxu0
        %v1007 = vpack.c.bf16 %v872, %v869
        %v1008 = vpack.c.bf16 %v938, %v935
        %v1010 = vsel %vm690, %v1007, 0
        %v1013 = vsel %vm690, %v1008, 0
        %1015 = vmatprep.subr.bf16.mxu0 0
        %1016 = vmatpush1.bf16.xpose.msra.mxu0 %v1013
        %1017 = vmatprep.subr.bf16.mxu0 0
        %1018 = vmatpush1.bf16.xpose.msra.mxu0 0
        %1019 = vmatprep.subr.bf16.mxu0 0
        %1020 = vmatpush1.bf16.xpose.msra.mxu0 0
        %1021 = vmatprep.subr.bf16.mxu0 0
        %1022 = vmatpush1.bf16.xpose.msra.mxu0 0
        %1023 = vmatprep.subr.bf16.mxu0 0
        %1024 = vmatpush1.bf16.xpose.msra.mxu0 0
        %1025 = vmatprep.subr.bf16.mxu0 0
        %1026 = vmatpush1.bf16.xpose.msra.mxu0 0
        %1027 = vmatprep.subr.bf16.mxu0 0
        %1028 = vmatpush1.bf16.xpose.msra.mxu0 0
        %1029 = vmatprep.subr.bf16.mxu0 0
        %1030 = vmatpush1.bf16.xpose.msra.mxu0 0
        %1031 = vmatprep.subr.bf16.mxu0 0
        %1032 = vmatpush1.bf16.xpose.msra.mxu0 0
        %1033 = vmatprep.subr.bf16.mxu0 0
        %1034 = vmatpush1.bf16.xpose.msra.mxu0 0
        %1035 = vmatprep.subr.bf16.mxu0 0
        %1036 = vmatpush1.bf16.xpose.msra.mxu0 0
        %1037 = vmatprep.subr.bf16.mxu0 0
        %1038 = vmatpush1.bf16.xpose.msra.mxu0 0
        %1039 = vmatprep.subr.bf16.mxu0 0
        %1040 = vmatpush1.bf16.xpose.msra.mxu0 0
        %1041 = vmatprep.subr.bf16.mxu0 0
        %1042 = vmatpush1.bf16.xpose.msra.mxu0 0
        %1043 = vmatprep.subr.bf16.mxu0 0
        %1044 = vmatpush1.bf16.xpose.msra.mxu0 0
        %1045 = vmatprep.subr.bf16.mxu0 0
        %1046 = vmatpush1.bf16.xpose.msra.mxu0 0
        %1047 = vmatprep.mubr.bf16.mxu0 0
        %1048 = vmatmul.mubr.bf16.gmra.mrb[0].mxu0 %v1010
        %v1049 = vpop.f32.mrb[0].mxu0
        %v1050 = vadd.f32 0.0, %v1049
        %v1051 = vpop.f32.mrb[0].mxu0
        %v1052 = vpop.f32.mrb[0].mxu0
        %v1053 = vadd.f32 0.0, %v1052
        %v1054 = vpop.f32.mrb[0].mxu0
        %1055 = vdwg.mxu0
        %v1056 = vsel %vm738, %v1050, -inf
        %1057 = vmax.xlane.f32.xlu0 %v1056
        %v1058 = vpop.xlane.xlu0 %1057
        %v1059 = vsel %vm738, %v1053, -inf
        %1060 = vmax.xlane.f32.xlu0 %v1059
        %v1061 = vpop.xlane.xlu0 %1060
        %v1062 = vsub.f32 %v1050, %v1058
        %v1063 = vsub.f32 %v1053, %v1061
        %v1064 = vmul.f32 %v1062, 1.442695
        %v1065 = vpow.pop %v1064
        %v1066 = vmul.f32 %v1063, 1.442695
        %v1067 = vpow.pop %v1066
        %v1068 = vsel %vm738, %v1065, 0.0
        %1069 = vadd.xlane.f32.xlu0 %v1068
        %v1070 = vpop.xlane.xlu0 %1069
        %v1071 = vsel %vm738, %v1067, 0.0
        %1072 = vadd.xlane.f32.xlu0 %v1071
        %v1073 = vpop.xlane.xlu0 %1072
        %v1074 = vrcp.pop %v1070
        %v1075 = vrcp.pop %v1073
        %v1076 = vmul.f32 %v1065, %v1074
        %v1077 = vmul.f32 %v1067, %v1075
        %v1078 = vpack.c.bf16 %v1077, %v1076
        %v1079 = vpack.c.bf16 %v1004, %v1001
        %v1081 = vsel %vm738, %v1078, 0
        %1083 = vmatprep.subr.bf16.mxu0 0
        %1084 = vmatpush1.bf16.msra.mxu0 %v1079
        %1085 = vmatprep.subr.bf16.mxu0 0
        %1086 = vmatpush1.bf16.msra.mxu0 0
        %1087 = vmatprep.subr.bf16.mxu0 0
        %1088 = vmatpush1.bf16.msra.mxu0 0
        %1089 = vmatprep.subr.bf16.mxu0 0
        %1090 = vmatpush1.bf16.msra.mxu0 0
        %1091 = vmatprep.subr.bf16.mxu0 0
        %1092 = vmatpush1.bf16.msra.mxu0 0
        %1093 = vmatprep.subr.bf16.mxu0 0
        %1094 = vmatpush1.bf16.msra.mxu0 0
        %1095 = vmatprep.subr.bf16.mxu0 0
        %1096 = vmatpush1.bf16.msra.mxu0 0
        %1097 = vmatprep.subr.bf16.mxu0 0
        %1098 = vmatpush1.bf16.msra.mxu0 0
        %1099 = vmatprep.subr.bf16.mxu0 0
        %1100 = vmatpush1.bf16.msra.mxu0 0
        %1101 = vmatprep.subr.bf16.mxu0 0
        %1102 = vmatpush1.bf16.msra.mxu0 0
        %1103 = vmatprep.subr.bf16.mxu0 0
        %1104 = vmatpush1.bf16.msra.mxu0 0
        %1105 = vmatprep.subr.bf16.mxu0 0
        %1106 = vmatpush1.bf16.msra.mxu0 0
        %1107 = vmatprep.subr.bf16.mxu0 0
        %1108 = vmatpush1.bf16.msra.mxu0 0
        %1109 = vmatprep.subr.bf16.mxu0 0
        %1110 = vmatpush1.bf16.msra.mxu0 0
        %1111 = vmatprep.subr.bf16.mxu0 0
        %1112 = vmatpush1.bf16.msra.mxu0 0
        %1113 = vmatprep.subr.bf16.mxu0 0
        %1114 = vmatpush1.bf16.msra.mxu0 0
        %1115 = vmatprep.mubr.bf16.mxu0 0
        %1116 = vmatmul.mubr.bf16.gmra.mrb[0].mxu0 %v1081
        %v1117 = vpop.f32.mrb[0].mxu0
        %v1118 = vadd.f32 0.0, %v1117
        %v1119 = vpop.f32.mrb[0].mxu0
        %v1120 = vpop.f32.mrb[0].mxu0
        %v1121 = vadd.f32 0.0, %v1120
        %v1122 = vpop.f32.mrb[0].mxu0
        %1123 = vdwg.mxu0
        %1126 = vrot.lane.b32.xlu0 %v1118, 8
        %v1127 = vpop.permute.xlu0 %1126
        %1128 = vrot.lane.b32.xlu0 %v1121, 8
        %v1129 = vpop.permute.xlu0 %1128
        %vm1132 = vcmask 130112
        %1133 = vst.msk [vmem:[#allocation2] sm:$0xff] %vm1132, %v1127
        %1134 = vst.msk [vmem:[#allocation2 + $0x8] sm:$0xff] %vm1132, %v1129
        %s1135 = scalar_lea.vmem %s3, 32
        %v1136 = vld [vmem:[%s1135] sm:$0xf]
        %v1137 = vld [vmem:[%s1135 + $0x4] sm:$0xf]
        %v1138 = vld [vmem:[%s1135 + $0x8] sm:$0xf]
        %v1139 = vld [vmem:[%s1135 + $0xc] sm:$0xf]
        %s1140 = scalar_lea.vmem %s4, 2
        %v1141 = vld [vmem:[%s1140] sm:$0x1]
        %v1143 = vlaneseq
        %v1144 = vshrl.u32 %v1143, 7
        %v1145 = vsub.s32 0, %v1144
        %v1146 = vrot.slane %v1141, %v1145
        %v1152 = vunpack.c.l.b16 %v1136
        %v1153 = vunpack.c.l.b16 %v1137
        %v1154 = vunpack.c.l.b16 %v1138
        %v1155 = vunpack.c.l.b16 %v1139
        %v1156 = vpack.c.b16 %v1153, %v1152
        %v1157 = vpack.c.b16 %v1155, %v1154
        %1160 = vmatprep.subr.bf16.mxu0 0
        %1161 = vmatpush1.bf16.msra.mxu0 %v1156
        %1162 = vmatprep.subr.bf16.mxu0 0
        %1163 = vmatpush1.bf16.msra.mxu0 %v1157
        %1164 = vmatprep.subr.bf16.mxu0 0
        %1165 = vmatpush1.bf16.msra.mxu0 0
        %1166 = vmatprep.subr.bf16.mxu0 0
        %1167 = vmatpush1.bf16.msra.mxu0 0
        %1168 = vmatprep.subr.bf16.mxu0 0
        %1169 = vmatpush1.bf16.msra.mxu0 0
        %1170 = vmatprep.subr.bf16.mxu0 0
        %1171 = vmatpush1.bf16.msra.mxu0 0
        %1172 = vmatprep.subr.bf16.mxu0 0
        %1173 = vmatpush1.bf16.msra.mxu0 0
        %1174 = vmatprep.subr.bf16.mxu0 0
        %1175 = vmatpush1.bf16.msra.mxu0 0
        %1176 = vmatprep.subr.bf16.mxu0 0
        %1177 = vmatpush1.bf16.msra.mxu0 0
        %1178 = vmatprep.subr.bf16.mxu0 0
        %1179 = vmatpush1.bf16.msra.mxu0 0
        %1180 = vmatprep.subr.bf16.mxu0 0
        %1181 = vmatpush1.bf16.msra.mxu0 0
        %1182 = vmatprep.subr.bf16.mxu0 0
        %1183 = vmatpush1.bf16.msra.mxu0 0
        %1184 = vmatprep.subr.bf16.mxu0 0
        %1185 = vmatpush1.bf16.msra.mxu0 0
        %1186 = vmatprep.subr.bf16.mxu0 0
        %1187 = vmatpush1.bf16.msra.mxu0 0
        %1188 = vmatprep.subr.bf16.mxu0 0
        %1189 = vmatpush1.bf16.msra.mxu0 0
        %1190 = vmatprep.subr.bf16.mxu0 0
        %1191 = vmatpush1.bf16.msra.mxu0 0
        %1192 = vmatprep.mubr.bf16.mxu0 0
        %1193 = vmatmul.mubr.bf16.gmra.mrb[0].mxu0 %v513
        %v1194 = vpop.f32.mrb[0].mxu0
        %v1195 = vadd.f32 %v1146, %v1194
        %v1196 = vpop.f32.mrb[0].mxu0
        %v1197 = vpop.f32.mrb[0].mxu0
        %v1198 = vadd.f32 %v1146, %v1197
        %v1199 = vpop.f32.mrb[0].mxu0
        %1200 = vdwg.mxu0
        %s1201 = scalar_lea.vmem %s3, 96
        %v1202 = vld [vmem:[%s1201] sm:$0xf]
        %v1203 = vld [vmem:[%s1201 + $0x4] sm:$0xf]
        %v1204 = vld [vmem:[%s1201 + $0x8] sm:$0xf]
        %v1205 = vld [vmem:[%s1201 + $0xc] sm:$0xf]
        %s1206 = scalar_lea.vmem %s4, 6
        %v1207 = vld [vmem:[%s1206] sm:$0x1]
        %v1209 = vlaneseq
        %v1210 = vshrl.u32 %v1209, 7
        %v1211 = vsub.s32 0, %v1210
        %v1212 = vrot.slane %v1207, %v1211
        %v1218 = vunpack.c.l.b16 %v1202
        %v1219 = vunpack.c.l.b16 %v1203
        %v1220 = vunpack.c.l.b16 %v1204
        %v1221 = vunpack.c.l.b16 %v1205
        %v1222 = vpack.c.b16 %v1219, %v1218
        %v1223 = vpack.c.b16 %v1221, %v1220
        %1226 = vmatprep.subr.bf16.mxu0 0
        %1227 = vmatpush1.bf16.msra.mxu0 %v1222
        %1228 = vmatprep.subr.bf16.mxu0 0
        %1229 = vmatpush1.bf16.msra.mxu0 %v1223
        %1230 = vmatprep.subr.bf16.mxu0 0
        %1231 = vmatpush1.bf16.msra.mxu0 0
        %1232 = vmatprep.subr.bf16.mxu0 0
        %1233 = vmatpush1.bf16.msra.mxu0 0
        %1234 = vmatprep.subr.bf16.mxu0 0
        %1235 = vmatpush1.bf16.msra.mxu0 0
        %1236 = vmatprep.subr.bf16.mxu0 0
        %1237 = vmatpush1.bf16.msra.mxu0 0
        %1238 = vmatprep.subr.bf16.mxu0 0
        %1239 = vmatpush1.bf16.msra.mxu0 0
        %1240 = vmatprep.subr.bf16.mxu0 0
        %1241 = vmatpush1.bf16.msra.mxu0 0
        %1242 = vmatprep.subr.bf16.mxu0 0
        %1243 = vmatpush1.bf16.msra.mxu0 0
        %1244 = vmatprep.subr.bf16.mxu0 0
        %1245 = vmatpush1.bf16.msra.mxu0 0
        %1246 = vmatprep.subr.bf16.mxu0 0
        %1247 = vmatpush1.bf16.msra.mxu0 0
        %1248 = vmatprep.subr.bf16.mxu0 0
        %1249 = vmatpush1.bf16.msra.mxu0 0
        %1250 = vmatprep.subr.bf16.mxu0 0
        %1251 = vmatpush1.bf16.msra.mxu0 0
        %1252 = vmatprep.subr.bf16.mxu0 0
        %1253 = vmatpush1.bf16.msra.mxu0 0
        %1254 = vmatprep.subr.bf16.mxu0 0
        %1255 = vmatpush1.bf16.msra.mxu0 0
        %1256 = vmatprep.subr.bf16.mxu0 0
        %1257 = vmatpush1.bf16.msra.mxu0 0
        %1258 = vmatprep.mubr.bf16.mxu0 0
        %1259 = vmatmul.mubr.bf16.gmra.mrb[0].mxu0 %v513
        %v1260 = vpop.f32.mrb[0].mxu0
        %v1261 = vadd.f32 %v1212, %v1260
        %v1262 = vpop.f32.mrb[0].mxu0
        %v1263 = vpop.f32.mrb[0].mxu0
        %v1264 = vadd.f32 %v1212, %v1263
        %v1265 = vpop.f32.mrb[0].mxu0
        %1266 = vdwg.mxu0
        %s1267 = scalar_lea.vmem %s3, 160
        %v1268 = vld [vmem:[%s1267] sm:$0xf]
        %v1269 = vld [vmem:[%s1267 + $0x4] sm:$0xf]
        %v1270 = vld [vmem:[%s1267 + $0x8] sm:$0xf]
        %v1271 = vld [vmem:[%s1267 + $0xc] sm:$0xf]
        %s1272 = scalar_lea.vmem %s4, 10
        %v1273 = vld [vmem:[%s1272] sm:$0x1]
        %v1275 = vlaneseq
        %v1276 = vshrl.u32 %v1275, 7
        %v1277 = vsub.s32 0, %v1276
        %v1278 = vrot.slane %v1273, %v1277
        %v1284 = vunpack.c.l.b16 %v1268
        %v1285 = vunpack.c.l.b16 %v1269
        %v1286 = vunpack.c.l.b16 %v1270
        %v1287 = vunpack.c.l.b16 %v1271
        %v1288 = vpack.c.b16 %v1285, %v1284
        %v1289 = vpack.c.b16 %v1287, %v1286
        %1292 = vmatprep.subr.bf16.mxu0 0
        %1293 = vmatpush1.bf16.msra.mxu0 %v1288
        %1294 = vmatprep.subr.bf16.mxu0 0
        %1295 = vmatpush1.bf16.msra.mxu0 %v1289
        %1296 = vmatprep.subr.bf16.mxu0 0
        %1297 = vmatpush1.bf16.msra.mxu0 0
        %1298 = vmatprep.subr.bf16.mxu0 0
        %1299 = vmatpush1.bf16.msra.mxu0 0
        %1300 = vmatprep.subr.bf16.mxu0 0
        %1301 = vmatpush1.bf16.msra.mxu0 0
        %1302 = vmatprep.subr.bf16.mxu0 0
        %1303 = vmatpush1.bf16.msra.mxu0 0
        %1304 = vmatprep.subr.bf16.mxu0 0
        %1305 = vmatpush1.bf16.msra.mxu0 0
        %1306 = vmatprep.subr.bf16.mxu0 0
        %1307 = vmatpush1.bf16.msra.mxu0 0
        %1308 = vmatprep.subr.bf16.mxu0 0
        %1309 = vmatpush1.bf16.msra.mxu0 0
        %1310 = vmatprep.subr.bf16.mxu0 0
        %1311 = vmatpush1.bf16.msra.mxu0 0
        %1312 = vmatprep.subr.bf16.mxu0 0
        %1313 = vmatpush1.bf16.msra.mxu0 0
        %1314 = vmatprep.subr.bf16.mxu0 0
        %1315 = vmatpush1.bf16.msra.mxu0 0
        %1316 = vmatprep.subr.bf16.mxu0 0
        %1317 = vmatpush1.bf16.msra.mxu0 0
        %1318 = vmatprep.subr.bf16.mxu0 0
        %1319 = vmatpush1.bf16.msra.mxu0 0
        %1320 = vmatprep.subr.bf16.mxu0 0
        %1321 = vmatpush1.bf16.msra.mxu0 0
        %1322 = vmatprep.subr.bf16.mxu0 0
        %1323 = vmatpush1.bf16.msra.mxu0 0
        %1324 = vmatprep.mubr.bf16.mxu0 0
        %1325 = vmatmul.mubr.bf16.gmra.mrb[0].mxu0 %v513
        %v1326 = vpop.f32.mrb[0].mxu0
        %v1327 = vadd.f32 %v1278, %v1326
        %v1328 = vpop.f32.mrb[0].mxu0
        %v1329 = vpop.f32.mrb[0].mxu0
        %v1330 = vadd.f32 %v1278, %v1329
        %v1331 = vpop.f32.mrb[0].mxu0
        %1332 = vdwg.mxu0
        %v1333 = vpack.c.bf16 %v1198, %v1195
        %v1334 = vpack.c.bf16 %v1264, %v1261
        %v1336 = vsel %vm690, %v1333, 0
        %v1339 = vsel %vm690, %v1334, 0
        %1341 = vmatprep.subr.bf16.mxu0 0
        %1342 = vmatpush1.bf16.xpose.msra.mxu0 %v1339
        %1343 = vmatprep.subr.bf16.mxu0 0
        %1344 = vmatpush1.bf16.xpose.msra.mxu0 0
        %1345 = vmatprep.subr.bf16.mxu0 0
        %1346 = vmatpush1.bf16.xpose.msra.mxu0 0
        %1347 = vmatprep.subr.bf16.mxu0 0
        %1348 = vmatpush1.bf16.xpose.msra.mxu0 0
        %1349 = vmatprep.subr.bf16.mxu0 0
        %1350 = vmatpush1.bf16.xpose.msra.mxu0 0
        %1351 = vmatprep.subr.bf16.mxu0 0
        %1352 = vmatpush1.bf16.xpose.msra.mxu0 0
        %1353 = vmatprep.subr.bf16.mxu0 0
        %1354 = vmatpush1.bf16.xpose.msra.mxu0 0
        %1355 = vmatprep.subr.bf16.mxu0 0
        %1356 = vmatpush1.bf16.xpose.msra.mxu0 0
        %1357 = vmatprep.subr.bf16.mxu0 0
        %1358 = vmatpush1.bf16.xpose.msra.mxu0 0
        %1359 = vmatprep.subr.bf16.mxu0 0
        %1360 = vmatpush1.bf16.xpose.msra.mxu0 0
        %1361 = vmatprep.subr.bf16.mxu0 0
        %1362 = vmatpush1.bf16.xpose.msra.mxu0 0
        %1363 = vmatprep.subr.bf16.mxu0 0
        %1364 = vmatpush1.bf16.xpose.msra.mxu0 0
        %1365 = vmatprep.subr.bf16.mxu0 0
        %1366 = vmatpush1.bf16.xpose.msra.mxu0 0
        %1367 = vmatprep.subr.bf16.mxu0 0
        %1368 = vmatpush1.bf16.xpose.msra.mxu0 0
        %1369 = vmatprep.subr.bf16.mxu0 0
        %1370 = vmatpush1.bf16.xpose.msra.mxu0 0
        %1371 = vmatprep.subr.bf16.mxu0 0
        %1372 = vmatpush1.bf16.xpose.msra.mxu0 0
        %1373 = vmatprep.mubr.bf16.mxu0 0
        %1374 = vmatmul.mubr.bf16.gmra.mrb[0].mxu0 %v1336
        %v1375 = vpop.f32.mrb[0].mxu0
        %v1376 = vadd.f32 0.0, %v1375
        %v1377 = vpop.f32.mrb[0].mxu0
        %v1378 = vpop.f32.mrb[0].mxu0
        %v1379 = vadd.f32 0.0, %v1378
        %v1380 = vpop.f32.mrb[0].mxu0
        %1381 = vdwg.mxu0
        %v1382 = vsel %vm738, %v1376, -inf
        %1383 = vmax.xlane.f32.xlu0 %v1382
        %v1384 = vpop.xlane.xlu0 %1383
        %v1385 = vsel %vm738, %v1379, -inf
        %1386 = vmax.xlane.f32.xlu0 %v1385
        %v1387 = vpop.xlane.xlu0 %1386
        %v1388 = vsub.f32 %v1376, %v1384
        %v1389 = vsub.f32 %v1379, %v1387
        %v1390 = vmul.f32 %v1388, 1.442695
        %v1391 = vpow.pop %v1390
        %v1392 = vmul.f32 %v1389, 1.442695
        %v1393 = vpow.pop %v1392
        %v1394 = vsel %vm738, %v1391, 0.0
        %1395 = vadd.xlane.f32.xlu0 %v1394
        %v1396 = vpop.xlane.xlu0 %1395
        %v1397 = vsel %vm738, %v1393, 0.0
        %1398 = vadd.xlane.f32.xlu0 %v1397
        %v1399 = vpop.xlane.xlu0 %1398
        %v1400 = vrcp.pop %v1396
        %v1401 = vrcp.pop %v1399
        %v1402 = vmul.f32 %v1391, %v1400
        %v1403 = vmul.f32 %v1393, %v1401
        %v1404 = vpack.c.bf16 %v1403, %v1402
        %v1405 = vpack.c.bf16 %v1330, %v1327
        %v1407 = vsel %vm738, %v1404, 0
        %1409 = vmatprep.subr.bf16.mxu0 0
        %1410 = vmatpush1.bf16.msra.mxu0 %v1405
        %1411 = vmatprep.subr.bf16.mxu0 0
        %1412 = vmatpush1.bf16.msra.mxu0 0
        %1413 = vmatprep.subr.bf16.mxu0 0
        %1414 = vmatpush1.bf16.msra.mxu0 0
        %1415 = vmatprep.subr.bf16.mxu0 0
        %1416 = vmatpush1.bf16.msra.mxu0 0
        %1417 = vmatprep.subr.bf16.mxu0 0
        %1418 = vmatpush1.bf16.msra.mxu0 0
        %1419 = vmatprep.subr.bf16.mxu0 0
        %1420 = vmatpush1.bf16.msra.mxu0 0
        %1421 = vmatprep.subr.bf16.mxu0 0
        %1422 = vmatpush1.bf16.msra.mxu0 0
        %1423 = vmatprep.subr.bf16.mxu0 0
        %1424 = vmatpush1.bf16.msra.mxu0 0
        %1425 = vmatprep.subr.bf16.mxu0 0
        %1426 = vmatpush1.bf16.msra.mxu0 0
        %1427 = vmatprep.subr.bf16.mxu0 0
        %1428 = vmatpush1.bf16.msra.mxu0 0
        %1429 = vmatprep.subr.bf16.mxu0 0
        %1430 = vmatpush1.bf16.msra.mxu0 0
        %1431 = vmatprep.subr.bf16.mxu0 0
        %1432 = vmatpush1.bf16.msra.mxu0 0
        %1433 = vmatprep.subr.bf16.mxu0 0
        %1434 = vmatpush1.bf16.msra.mxu0 0
        %1435 = vmatprep.subr.bf16.mxu0 0
        %1436 = vmatpush1.bf16.msra.mxu0 0
        %1437 = vmatprep.subr.bf16.mxu0 0
        %1438 = vmatpush1.bf16.msra.mxu0 0
        %1439 = vmatprep.subr.bf16.mxu0 0
        %1440 = vmatpush1.bf16.msra.mxu0 0
        %1441 = vmatprep.mubr.bf16.mxu0 0
        %1442 = vmatmul.mubr.bf16.gmra.mrb[0].mxu0 %v1407
        %v1443 = vpop.f32.mrb[0].mxu0
        %v1444 = vadd.f32 0.0, %v1443
        %v1445 = vpop.f32.mrb[0].mxu0
        %v1446 = vpop.f32.mrb[0].mxu0
        %v1447 = vadd.f32 0.0, %v1446
        %v1448 = vpop.f32.mrb[0].mxu0
        %1449 = vdwg.mxu0
        %1452 = vrot.lane.b32.xlu0 %v1444, 16
        %v1453 = vpop.permute.xlu0 %1452
        %1454 = vrot.lane.b32.xlu0 %v1447, 16
        %v1455 = vpop.permute.xlu0 %1454
        %vm1458 = vcmask 195712
        %1459 = vst.msk [vmem:[#allocation2] sm:$0xff] %vm1458, %v1453
        %1460 = vst.msk [vmem:[#allocation2 + $0x8] sm:$0xff] %vm1458, %v1455
        %s1461 = scalar_lea.vmem %s3, 48
        %v1462 = vld [vmem:[%s1461] sm:$0xf]
        %v1463 = vld [vmem:[%s1461 + $0x4] sm:$0xf]
        %v1464 = vld [vmem:[%s1461 + $0x8] sm:$0xf]
        %v1465 = vld [vmem:[%s1461 + $0xc] sm:$0xf]
        %s1466 = scalar_lea.vmem %s4, 3
        %v1467 = vld [vmem:[%s1466] sm:$0x1]
        %v1469 = vlaneseq
        %v1470 = vshrl.u32 %v1469, 7
        %v1471 = vsub.s32 0, %v1470
        %v1472 = vrot.slane %v1467, %v1471
        %v1478 = vunpack.c.l.b16 %v1462
        %v1479 = vunpack.c.l.b16 %v1463
        %v1480 = vunpack.c.l.b16 %v1464
        %v1481 = vunpack.c.l.b16 %v1465
        %v1482 = vpack.c.b16 %v1479, %v1478
        %v1483 = vpack.c.b16 %v1481, %v1480
        %1486 = vmatprep.subr.bf16.mxu0 0
        %1487 = vmatpush1.bf16.msra.mxu0 %v1482
        %1488 = vmatprep.subr.bf16.mxu0 0
        %1489 = vmatpush1.bf16.msra.mxu0 %v1483
        %1490 = vmatprep.subr.bf16.mxu0 0
        %1491 = vmatpush1.bf16.msra.mxu0 0
        %1492 = vmatprep.subr.bf16.mxu0 0
        %1493 = vmatpush1.bf16.msra.mxu0 0
        %1494 = vmatprep.subr.bf16.mxu0 0
        %1495 = vmatpush1.bf16.msra.mxu0 0
        %1496 = vmatprep.subr.bf16.mxu0 0
        %1497 = vmatpush1.bf16.msra.mxu0 0
        %1498 = vmatprep.subr.bf16.mxu0 0
        %1499 = vmatpush1.bf16.msra.mxu0 0
        %1500 = vmatprep.subr.bf16.mxu0 0
        %1501 = vmatpush1.bf16.msra.mxu0 0
        %1502 = vmatprep.subr.bf16.mxu0 0
        %1503 = vmatpush1.bf16.msra.mxu0 0
        %1504 = vmatprep.subr.bf16.mxu0 0
        %1505 = vmatpush1.bf16.msra.mxu0 0
        %1506 = vmatprep.subr.bf16.mxu0 0
        %1507 = vmatpush1.bf16.msra.mxu0 0
        %1508 = vmatprep.subr.bf16.mxu0 0
        %1509 = vmatpush1.bf16.msra.mxu0 0
        %1510 = vmatprep.subr.bf16.mxu0 0
        %1511 = vmatpush1.bf16.msra.mxu0 0
        %1512 = vmatprep.subr.bf16.mxu0 0
        %1513 = vmatpush1.bf16.msra.mxu0 0
        %1514 = vmatprep.subr.bf16.mxu0 0
        %1515 = vmatpush1.bf16.msra.mxu0 0
        %1516 = vmatprep.subr.bf16.mxu0 0
        %1517 = vmatpush1.bf16.msra.mxu0 0
        %1518 = vmatprep.mubr.bf16.mxu0 0
        %1519 = vmatmul.mubr.bf16.gmra.mrb[0].mxu0 %v513
        %v1520 = vpop.f32.mrb[0].mxu0
        %v1521 = vadd.f32 %v1472, %v1520
        %v1522 = vpop.f32.mrb[0].mxu0
        %v1523 = vpop.f32.mrb[0].mxu0
        %v1524 = vadd.f32 %v1472, %v1523
        %v1525 = vpop.f32.mrb[0].mxu0
        %1526 = vdwg.mxu0
        %s1527 = scalar_lea.vmem %s3, 112
        %v1528 = vld [vmem:[%s1527] sm:$0xf]
        %v1529 = vld [vmem:[%s1527 + $0x4] sm:$0xf]
        %v1530 = vld [vmem:[%s1527 + $0x8] sm:$0xf]
        %v1531 = vld [vmem:[%s1527 + $0xc] sm:$0xf]
        %s1532 = scalar_lea.vmem %s4, 7
        %v1533 = vld [vmem:[%s1532] sm:$0x1]
        %v1535 = vlaneseq
        %v1536 = vshrl.u32 %v1535, 7
        %v1537 = vsub.s32 0, %v1536
        %v1538 = vrot.slane %v1533, %v1537
        %v1544 = vunpack.c.l.b16 %v1528
        %v1545 = vunpack.c.l.b16 %v1529
        %v1546 = vunpack.c.l.b16 %v1530
        %v1547 = vunpack.c.l.b16 %v1531
        %v1548 = vpack.c.b16 %v1545, %v1544
        %v1549 = vpack.c.b16 %v1547, %v1546
        %1552 = vmatprep.subr.bf16.mxu0 0
        %1553 = vmatpush1.bf16.msra.mxu0 %v1548
        %1554 = vmatprep.subr.bf16.mxu0 0
        %1555 = vmatpush1.bf16.msra.mxu0 %v1549
        %1556 = vmatprep.subr.bf16.mxu0 0
        %1557 = vmatpush1.bf16.msra.mxu0 0
        %1558 = vmatprep.subr.bf16.mxu0 0
        %1559 = vmatpush1.bf16.msra.mxu0 0
        %1560 = vmatprep.subr.bf16.mxu0 0
        %1561 = vmatpush1.bf16.msra.mxu0 0
        %1562 = vmatprep.subr.bf16.mxu0 0
        %1563 = vmatpush1.bf16.msra.mxu0 0
        %1564 = vmatprep.subr.bf16.mxu0 0
        %1565 = vmatpush1.bf16.msra.mxu0 0
        %1566 = vmatprep.subr.bf16.mxu0 0
        %1567 = vmatpush1.bf16.msra.mxu0 0
        %1568 = vmatprep.subr.bf16.mxu0 0
        %1569 = vmatpush1.bf16.msra.mxu0 0
        %1570 = vmatprep.subr.bf16.mxu0 0
        %1571 = vmatpush1.bf16.msra.mxu0 0
        %1572 = vmatprep.subr.bf16.mxu0 0
        %1573 = vmatpush1.bf16.msra.mxu0 0
        %1574 = vmatprep.subr.bf16.mxu0 0
        %1575 = vmatpush1.bf16.msra.mxu0 0
        %1576 = vmatprep.subr.bf16.mxu0 0
        %1577 = vmatpush1.bf16.msra.mxu0 0
        %1578 = vmatprep.subr.bf16.mxu0 0
        %1579 = vmatpush1.bf16.msra.mxu0 0
        %1580 = vmatprep.subr.bf16.mxu0 0
        %1581 = vmatpush1.bf16.msra.mxu0 0
        %1582 = vmatprep.subr.bf16.mxu0 0
        %1583 = vmatpush1.bf16.msra.mxu0 0
        %1584 = vmatprep.mubr.bf16.mxu0 0
        %1585 = vmatmul.mubr.bf16.gmra.mrb[0].mxu0 %v513
        %v1586 = vpop.f32.mrb[0].mxu0
        %v1587 = vadd.f32 %v1538, %v1586
        %v1588 = vpop.f32.mrb[0].mxu0
        %v1589 = vpop.f32.mrb[0].mxu0
        %v1590 = vadd.f32 %v1538, %v1589
        %v1591 = vpop.f32.mrb[0].mxu0
        %1592 = vdwg.mxu0
        %s1593 = scalar_lea.vmem %s3, 176
        %v1594 = vld [vmem:[%s1593] sm:$0xf]
        %v1595 = vld [vmem:[%s1593 + $0x4] sm:$0xf]
        %v1596 = vld [vmem:[%s1593 + $0x8] sm:$0xf]
        %v1597 = vld [vmem:[%s1593 + $0xc] sm:$0xf]
        %s1598 = scalar_lea.vmem %s4, 11
        %v1599 = vld [vmem:[%s1598] sm:$0x1]
        %v1601 = vlaneseq
        %v1602 = vshrl.u32 %v1601, 7
        %v1603 = vsub.s32 0, %v1602
        %v1604 = vrot.slane %v1599, %v1603
        %v1610 = vunpack.c.l.b16 %v1594
        %v1611 = vunpack.c.l.b16 %v1595
        %v1612 = vunpack.c.l.b16 %v1596
        %v1613 = vunpack.c.l.b16 %v1597
        %v1614 = vpack.c.b16 %v1611, %v1610
        %v1615 = vpack.c.b16 %v1613, %v1612
        %1618 = vmatprep.subr.bf16.mxu0 0
        %1619 = vmatpush1.bf16.msra.mxu0 %v1614
        %1620 = vmatprep.subr.bf16.mxu0 0
        %1621 = vmatpush1.bf16.msra.mxu0 %v1615
        %1622 = vmatprep.subr.bf16.mxu0 0
        %1623 = vmatpush1.bf16.msra.mxu0 0
        %1624 = vmatprep.subr.bf16.mxu0 0
        %1625 = vmatpush1.bf16.msra.mxu0 0
        %1626 = vmatprep.subr.bf16.mxu0 0
        %1627 = vmatpush1.bf16.msra.mxu0 0
        %1628 = vmatprep.subr.bf16.mxu0 0
        %1629 = vmatpush1.bf16.msra.mxu0 0
        %1630 = vmatprep.subr.bf16.mxu0 0
        %1631 = vmatpush1.bf16.msra.mxu0 0
        %1632 = vmatprep.subr.bf16.mxu0 0
        %1633 = vmatpush1.bf16.msra.mxu0 0
        %1634 = vmatprep.subr.bf16.mxu0 0
        %1635 = vmatpush1.bf16.msra.mxu0 0
        %1636 = vmatprep.subr.bf16.mxu0 0
        %1637 = vmatpush1.bf16.msra.mxu0 0
        %1638 = vmatprep.subr.bf16.mxu0 0
        %1639 = vmatpush1.bf16.msra.mxu0 0
        %1640 = vmatprep.subr.bf16.mxu0 0
        %1641 = vmatpush1.bf16.msra.mxu0 0
        %1642 = vmatprep.subr.bf16.mxu0 0
        %1643 = vmatpush1.bf16.msra.mxu0 0
        %1644 = vmatprep.subr.bf16.mxu0 0
        %1645 = vmatpush1.bf16.msra.mxu0 0
        %1646 = vmatprep.subr.bf16.mxu0 0
        %1647 = vmatpush1.bf16.msra.mxu0 0
        %1648 = vmatprep.subr.bf16.mxu0 0
        %1649 = vmatpush1.bf16.msra.mxu0 0
        %1650 = vmatprep.mubr.bf16.mxu0 0
        %1651 = vmatmul.mubr.bf16.gmra.mrb[0].mxu0 %v513
        %v1652 = vpop.f32.mrb[0].mxu0
        %v1653 = vadd.f32 %v1604, %v1652
        %v1654 = vpop.f32.mrb[0].mxu0
        %v1655 = vpop.f32.mrb[0].mxu0
        %v1656 = vadd.f32 %v1604, %v1655
        %v1657 = vpop.f32.mrb[0].mxu0
        %1658 = vdwg.mxu0
        %v1659 = vpack.c.bf16 %v1524, %v1521
        %v1660 = vpack.c.bf16 %v1590, %v1587
        %v1662 = vsel %vm690, %v1659, 0
        %v1665 = vsel %vm690, %v1660, 0
        %1667 = vmatprep.subr.bf16.mxu0 0
        %1668 = vmatpush1.bf16.xpose.msra.mxu0 %v1665
        %1669 = vmatprep.subr.bf16.mxu0 0
        %1670 = vmatpush1.bf16.xpose.msra.mxu0 0
        %1671 = vmatprep.subr.bf16.mxu0 0
        %1672 = vmatpush1.bf16.xpose.msra.mxu0 0
        %1673 = vmatprep.subr.bf16.mxu0 0
        %1674 = vmatpush1.bf16.xpose.msra.mxu0 0
        %1675 = vmatprep.subr.bf16.mxu0 0
        %1676 = vmatpush1.bf16.xpose.msra.mxu0 0
        %1677 = vmatprep.subr.bf16.mxu0 0
        %1678 = vmatpush1.bf16.xpose.msra.mxu0 0
        %1679 = vmatprep.subr.bf16.mxu0 0
        %1680 = vmatpush1.bf16.xpose.msra.mxu0 0
        %1681 = vmatprep.subr.bf16.mxu0 0
        %1682 = vmatpush1.bf16.xpose.msra.mxu0 0
        %1683 = vmatprep.subr.bf16.mxu0 0
        %1684 = vmatpush1.bf16.xpose.msra.mxu0 0
        %1685 = vmatprep.subr.bf16.mxu0 0
        %1686 = vmatpush1.bf16.xpose.msra.mxu0 0
        %1687 = vmatprep.subr.bf16.mxu0 0
        %1688 = vmatpush1.bf16.xpose.msra.mxu0 0
        %1689 = vmatprep.subr.bf16.mxu0 0
        %1690 = vmatpush1.bf16.xpose.msra.mxu0 0
        %1691 = vmatprep.subr.bf16.mxu0 0
        %1692 = vmatpush1.bf16.xpose.msra.mxu0 0
        %1693 = vmatprep.subr.bf16.mxu0 0
        %1694 = vmatpush1.bf16.xpose.msra.mxu0 0
        %1695 = vmatprep.subr.bf16.mxu0 0
        %1696 = vmatpush1.bf16.xpose.msra.mxu0 0
        %1697 = vmatprep.subr.bf16.mxu0 0
        %1698 = vmatpush1.bf16.xpose.msra.mxu0 0
        %1699 = vmatprep.mubr.bf16.mxu0 0
        %1700 = vmatmul.mubr.bf16.gmra.mrb[0].mxu0 %v1662
        %v1701 = vpop.f32.mrb[0].mxu0
        %v1702 = vadd.f32 0.0, %v1701
        %v1703 = vpop.f32.mrb[0].mxu0
        %v1704 = vpop.f32.mrb[0].mxu0
        %v1705 = vadd.f32 0.0, %v1704
        %v1706 = vpop.f32.mrb[0].mxu0
        %1707 = vdwg.mxu0
        %v1708 = vsel %vm738, %v1702, -inf
        %1709 = vmax.xlane.f32.xlu0 %v1708
        %v1710 = vpop.xlane.xlu0 %1709
        %v1711 = vsel %vm738, %v1705, -inf
        %1712 = vmax.xlane.f32.xlu0 %v1711
        %v1713 = vpop.xlane.xlu0 %1712
        %v1714 = vsub.f32 %v1702, %v1710
        %v1715 = vsub.f32 %v1705, %v1713
        %v1716 = vmul.f32 %v1714, 1.442695
        %v1717 = vpow.pop %v1716
        %v1718 = vmul.f32 %v1715, 1.442695
        %v1719 = vpow.pop %v1718
        %v1720 = vsel %vm738, %v1717, 0.0
        %1721 = vadd.xlane.f32.xlu0 %v1720
        %v1722 = vpop.xlane.xlu0 %1721
        %v1723 = vsel %vm738, %v1719, 0.0
        %1724 = vadd.xlane.f32.xlu0 %v1723
        %v1725 = vpop.xlane.xlu0 %1724
        %v1726 = vrcp.pop %v1722
        %v1727 = vrcp.pop %v1725
        %v1728 = vmul.f32 %v1717, %v1726
        %v1729 = vmul.f32 %v1719, %v1727
        %v1730 = vpack.c.bf16 %v1729, %v1728
        %v1731 = vpack.c.bf16 %v1656, %v1653
        %v1733 = vsel %vm738, %v1730, 0
        %1735 = vmatprep.subr.bf16.mxu0 0
        %1736 = vmatpush1.bf16.msra.mxu0 %v1731
        %1737 = vmatprep.subr.bf16.mxu0 0
        %1738 = vmatpush1.bf16.msra.mxu0 0
        %1739 = vmatprep.subr.bf16.mxu0 0
        %1740 = vmatpush1.bf16.msra.mxu0 0
        %1741 = vmatprep.subr.bf16.mxu0 0
        %1742 = vmatpush1.bf16.msra.mxu0 0
        %1743 = vmatprep.subr.bf16.mxu0 0
        %1744 = vmatpush1.bf16.msra.mxu0 0
        %1745 = vmatprep.subr.bf16.mxu0 0
        %1746 = vmatpush1.bf16.msra.mxu0 0
        %1747 = vmatprep.subr.bf16.mxu0 0
        %1748 = vmatpush1.bf16.msra.mxu0 0
        %1749 = vmatprep.subr.bf16.mxu0 0
        %1750 = vmatpush1.bf16.msra.mxu0 0
        %1751 = vmatprep.subr.bf16.mxu0 0
        %1752 = vmatpush1.bf16.msra.mxu0 0
        %1753 = vmatprep.subr.bf16.mxu0 0
        %1754 = vmatpush1.bf16.msra.mxu0 0
        %1755 = vmatprep.subr.bf16.mxu0 0
        %1756 = vmatpush1.bf16.msra.mxu0 0
        %1757 = vmatprep.subr.bf16.mxu0 0
        %1758 = vmatpush1.bf16.msra.mxu0 0
        %1759 = vmatprep.subr.bf16.mxu0 0
        %1760 = vmatpush1.bf16.msra.mxu0 0
        %1761 = vmatprep.subr.bf16.mxu0 0
        %1762 = vmatpush1.bf16.msra.mxu0 0
        %1763 = vmatprep.subr.bf16.mxu0 0
        %1764 = vmatpush1.bf16.msra.mxu0 0
        %1765 = vmatprep.subr.bf16.mxu0 0
        %1766 = vmatpush1.bf16.msra.mxu0 0
        %1767 = vmatprep.mubr.bf16.mxu0 0
        %1768 = vmatmul.mubr.bf16.gmra.mrb[0].mxu0 %v1733
        %v1769 = vpop.f32.mrb[0].mxu0
        %v1770 = vadd.f32 0.0, %v1769
        %v1771 = vpop.f32.mrb[0].mxu0
        %v1772 = vpop.f32.mrb[0].mxu0
        %v1773 = vadd.f32 0.0, %v1772
        %v1774 = vpop.f32.mrb[0].mxu0
        %1775 = vdwg.mxu0
        %1778 = vrot.lane.b32.xlu0 %v1770, 24
        %v1779 = vpop.permute.xlu0 %1778
        %1780 = vrot.lane.b32.xlu0 %v1773, 24
        %v1781 = vpop.permute.xlu0 %1780
        %vm1784 = vcmask 261312
        %1785 = vst.msk [vmem:[#allocation2] sm:$0xff] %vm1784, %v1779
        %1786 = vst.msk [vmem:[#allocation2 + $0x8] sm:$0xff] %vm1784, %v1781
        %v1787 = vld [vmem:[#allocation2] sm:$0xff]
        %v1788 = vld [vmem:[#allocation2 + $0x8] sm:$0xff]
        %v1789 = vpack.c.bf16 %v1788, %v1787
        %v1790 = vld [vmem:[%s5] sm:$0xf]
        %v1791 = vld [vmem:[%s5 + $0x4] sm:$0xf]
        %v1792 = vld [vmem:[%s5 + $0x8] sm:$0xf]
        %v1793 = vld [vmem:[%s5 + $0xc] sm:$0xf]
        %v1798 = vunpack.c.l.b16 %v1790
        %v1799 = vunpack.c.l.b16 %v1791
        %v1800 = vunpack.c.l.b16 %v1792
        %v1801 = vunpack.c.l.b16 %v1793
        %v1802 = vpack.c.b16 %v1799, %v1798
        %v1803 = vpack.c.b16 %v1801, %v1800
        %v1807 = vsel %vm444, %v1789, 0
        %1809 = vmatprep.subr.bf16.mxu0 0
        %1810 = vmatpush1.bf16.msra.mxu0 %v1802
        %1811 = vmatprep.subr.bf16.mxu0 0
        %1812 = vmatpush1.bf16.msra.mxu0 %v1803
        %1813 = vmatprep.subr.bf16.mxu0 0
        %1814 = vmatpush1.bf16.msra.mxu0 0
        %1815 = vmatprep.subr.bf16.mxu0 0
        %1816 = vmatpush1.bf16.msra.mxu0 0
        %1817 = vmatprep.subr.bf16.mxu0 0
        %1818 = vmatpush1.bf16.msra.mxu0 0
        %1819 = vmatprep.subr.bf16.mxu0 0
        %1820 = vmatpush1.bf16.msra.mxu0 0
        %1821 = vmatprep.subr.bf16.mxu0 0
        %1822 = vmatpush1.bf16.msra.mxu0 0
        %1823 = vmatprep.subr.bf16.mxu0 0
        %1824 = vmatpush1.bf16.msra.mxu0 0
        %1825 = vmatprep.subr.bf16.mxu0 0
        %1826 = vmatpush1.bf16.msra.mxu0 0
        %1827 = vmatprep.subr.bf16.mxu0 0
        %1828 = vmatpush1.bf16.msra.mxu0 0
        %1829 = vmatprep.subr.bf16.mxu0 0
        %1830 = vmatpush1.bf16.msra.mxu0 0
        %1831 = vmatprep.subr.bf16.mxu0 0
        %1832 = vmatpush1.bf16.msra.mxu0 0
        %1833 = vmatprep.subr.bf16.mxu0 0
        %1834 = vmatpush1.bf16.msra.mxu0 0
        %1835 = vmatprep.subr.bf16.mxu0 0
        %1836 = vmatpush1.bf16.msra.mxu0 0
        %1837 = vmatprep.subr.bf16.mxu0 0
        %1838 = vmatpush1.bf16.msra.mxu0 0
        %1839 = vmatprep.subr.bf16.mxu0 0
        %1840 = vmatpush1.bf16.msra.mxu0 0
        %1841 = vmatprep.mubr.bf16.mxu0 0
        %1842 = vmatmul.mubr.bf16.gmra.mrb[0].mxu0 %v1807
        %v1843 = vpop.f32.mrb[0].mxu0
        %v1844 = vadd.f32 0.0, %v1843
        %v1845 = vpop.f32.mrb[0].mxu0
        %v1846 = vpop.f32.mrb[0].mxu0
        %v1847 = vadd.f32 0.0, %v1846
        %v1848 = vpop.f32.mrb[0].mxu0
        %1849 = vdwg.mxu0
        %v1850 = vadd.f32 %v440, %v1844
        %v1851 = vadd.f32 %v441, %v1847
        %v1852 = vld [vmem:[%s6] sm:$0x1]
        %v1854 = vlaneseq
        %v1855 = vshrl.u32 %v1854, 7
        %v1856 = vsub.s32 0, %v1855
        %v1857 = vrot.slane %v1852, %v1856
        %v1859 = vadd.f32 %v1850, %v1857
        %v1860 = vadd.f32 %v1851, %v1857
        %v1861 = vld [vmem:[%s7] sm:$0x1]
        %v1862 = vld [vmem:[%s8] sm:$0x1]
        %v1863 = vsel %vm444, %v1859, 0.0
        %1864 = vadd.xlane.f32.xlu0 %v1863
        %v1865 = vpop.xlane.xlu0 %1864
        %v1866 = vsel %vm444, %v1860, 0.0
        %1867 = vadd.xlane.f32.xlu0 %v1866
        %v1868 = vpop.xlane.xlu0 %1867
        %v1869 = vmul.f32 %v1865, %v451
        %v1870 = vmul.f32 %v1868, %v451
        %v1871 = vsub.f32 %v1859, %v1869
        %v1872 = vsub.f32 %v1860, %v1870
        %v1873 = vmul.f32 %v1871, %v1871
        %v1874 = vmul.f32 %v1872, %v1872
        %v1875 = vsel %vm444, %v1873, 0.0
        %1876 = vadd.xlane.f32.xlu0 %v1875
        %v1877 = vpop.xlane.xlu0 %1876
        %v1878 = vsel %vm444, %v1874, 0.0
        %1879 = vadd.xlane.f32.xlu0 %v1878
        %v1880 = vpop.xlane.xlu0 %1879
        %v1881 = vmul.f32 %v1877, %v451
        %v1882 = vmul.f32 %v1880, %v451
        %v1883 = vadd.f32 %v1881, 1e-06
        %v1884 = vadd.f32 %v1882, 1e-06
        %v1885 = vrsqrt.pop %v1883
        %v1886 = vrsqrt.pop %v1884
        %v1887 = vmul.f32 %v1871, %v1885
        %v1888 = vmul.f32 %v1872, %v1886
        %v1890 = vlaneseq
        %v1891 = vshrl.u32 %v1890, 7
        %v1892 = vsub.s32 0, %v1891
        %v1893 = vrot.slane %v1861, %v1892
        %v1895 = vmul.f32 %v1887, %v1893
        %v1896 = vmul.f32 %v1888, %v1893
        %v1898 = vlaneseq
        %v1899 = vshrl.u32 %v1898, 7
        %v1900 = vsub.s32 0, %v1899
        %v1901 = vrot.slane %v1862, %v1900
        %v1903 = vadd.f32 %v1895, %v1901
        %v1904 = vadd.f32 %v1896, %v1901
        %v1905 = vpack.c.bf16 %v1904, %v1903
        %v1906 = vld [vmem:[%s9] sm:$0xf]
        %v1907 = vld [vmem:[%s9 + $0x4] sm:$0xf]
        %v1908 = vld [vmem:[%s9 + $0x8] sm:$0xf]
        %v1909 = vld [vmem:[%s9 + $0xc] sm:$0xf]
        %v1910 = vld [vmem:[%s10] sm:$0x1]
        %v1912 = vlaneseq
        %v1913 = vshrl.u32 %v1912, 7
        %v1914 = vsub.s32 0, %v1913
        %v1915 = vrot.slane %v1910, %v1914
        %v1921 = vunpack.c.l.b16 %v1906
        %v1922 = vunpack.c.l.b16 %v1907
        %v1923 = vunpack.c.l.b16 %v1908
        %v1924 = vunpack.c.l.b16 %v1909
        %v1925 = vpack.c.b16 %v1922, %v1921
        %v1926 = vpack.c.b16 %v1924, %v1923
        %v1930 = vsel %vm444, %v1905, 0
        %1932 = vmatprep.subr.bf16.mxu0 0
        %1933 = vmatpush1.bf16.msra.mxu0 %v1925
        %1934 = vmatprep.subr.bf16.mxu0 0
        %1935 = vmatpush1.bf16.msra.mxu0 %v1926
        %1936 = vmatprep.subr.bf16.mxu0 0
        %1937 = vmatpush1.bf16.msra.mxu0 0
        %1938 = vmatprep.subr.bf16.mxu0 0
        %1939 = vmatpush1.bf16.msra.mxu0 0
        %1940 = vmatprep.subr.bf16.mxu0 0
        %1941 = vmatpush1.bf16.msra.mxu0 0
        %1942 = vmatprep.subr.bf16.mxu0 0
        %1943 = vmatpush1.bf16.msra.mxu0 0
        %1944 = vmatprep.subr.bf16.mxu0 0
        %1945 = vmatpush1.bf16.msra.mxu0 0
        %1946 = vmatprep.subr.bf16.mxu0 0
        %1947 = vmatpush1.bf16.msra.mxu0 0
        %1948 = vmatprep.subr.bf16.mxu0 0
        %1949 = vmatpush1.bf16.msra.mxu0 0
        %1950 = vmatprep.subr.bf16.mxu0 0
        %1951 = vmatpush1.bf16.msra.mxu0 0
        %1952 = vmatprep.subr.bf16.mxu0 0
        %1953 = vmatpush1.bf16.msra.mxu0 0
        %1954 = vmatprep.subr.bf16.mxu0 0
        %1955 = vmatpush1.bf16.msra.mxu0 0
        %1956 = vmatprep.subr.bf16.mxu0 0
        %1957 = vmatpush1.bf16.msra.mxu0 0
        %1958 = vmatprep.subr.bf16.mxu0 0
        %1959 = vmatpush1.bf16.msra.mxu0 0
        %1960 = vmatprep.subr.bf16.mxu0 0
        %1961 = vmatpush1.bf16.msra.mxu0 0
        %1962 = vmatprep.subr.bf16.mxu0 0
        %1963 = vmatpush1.bf16.msra.mxu0 0
        %1964 = vmatprep.mubr.bf16.mxu0 0
        %1965 = vmatmul.mubr.bf16.gmra.mrb[0].mxu0 %v1930
        %v1966 = vpop.f32.mrb[0].mxu0
        %v1967 = vadd.f32 %v1915, %v1966
        %v1968 = vpop.f32.mrb[0].mxu0
        %v1969 = vpop.f32.mrb[0].mxu0
        %v1970 = vadd.f32 %v1915, %v1969
        %v1971 = vpop.f32.mrb[0].mxu0
        %1972 = vdwg.mxu0
        %v1973 = vmul.f32 %v1967, 0.5
        %v1974 = vmul.f32 %v1970, 0.5
        %v1975 = vmul.f32 %v1967, 0.044715
        %v1976 = vmul.f32 %v1970, 0.044715
        %v1977 = vmul.f32 %v1975, %v1967
        %v1978 = vmul.f32 %v1976, %v1970
        %v1979 = vmul.f32 %v1977, %v1967
        %v1980 = vmul.f32 %v1978, %v1970
        %v1981 = vadd.f32 %v1967, %v1979
        %v1982 = vadd.f32 %v1970, %v1980
        %v1983 = vmul.f32 %v1981, 0.7978845
        %v1984 = vmul.f32 %v1982, 0.7978845
        %v1985 = vtanh.pop %v1983
        %v1986 = vtanh.pop %v1984
        %v1987 = vadd.f32 %v1985, 1.0
        %v1988 = vadd.f32 %v1986, 1.0
        %v1989 = vmul.f32 %v1973, %v1987
        %v1990 = vmul.f32 %v1974, %v1988
        %v1991 = vpack.c.bf16 %v1990, %v1989
        %v1992 = vld [vmem:[%s11] sm:$0xf]
        %v1993 = vld [vmem:[%s11 + $0x4] sm:$0xf]
        %v1994 = vld [vmem:[%s11 + $0x8] sm:$0xf]
        %v1995 = vld [vmem:[%s11 + $0xc] sm:$0xf]
        %v1996 = vld [vmem:[%s11 + $0x10] sm:$0xf]
        %v1997 = vld [vmem:[%s11 + $0x14] sm:$0xf]
        %v1998 = vld [vmem:[%s11 + $0x18] sm:$0xf]
        %v1999 = vld [vmem:[%s11 + $0x1c] sm:$0xf]
        %v2000 = vld [vmem:[%s12] sm:$0x1]
        %v2002 = vlaneseq
        %v2003 = vshrl.u32 %v2002, 7
        %v2004 = vsub.s32 0, %v2003
        %v2005 = vrot.slane %v2000, %v2004
        %v2015 = vunpack.c.l.b16 %v1992
        %v2016 = vunpack.c.l.b16 %v1993
        %v2017 = vunpack.c.l.b16 %v1994
        %v2018 = vunpack.c.l.b16 %v1995
        %v2019 = vunpack.c.l.b16 %v1996
        %v2020 = vunpack.c.l.b16 %v1997
        %v2021 = vunpack.c.l.b16 %v1998
        %v2022 = vunpack.c.l.b16 %v1999
        %v2023 = vpack.c.b16 %v2016, %v2015
        %v2024 = vpack.c.b16 %v2018, %v2017
        %v2025 = vpack.c.b16 %v2020, %v2019
        %v2026 = vpack.c.b16 %v2022, %v2021
        %vm2031 = vcmask 523264
        %v2033 = vsel %vm2031, %v1991, 0
        %2035 = vmatprep.subr.bf16.mxu0 0
        %2036 = vmatpush1.bf16.msra.mxu0 %v2023
        %2037 = vmatprep.subr.bf16.mxu0 0
        %2038 = vmatpush1.bf16.msra.mxu0 %v2024
        %2039 = vmatprep.subr.bf16.mxu0 0
        %2040 = vmatpush1.bf16.msra.mxu0 %v2025
        %2041 = vmatprep.subr.bf16.mxu0 0
        %2042 = vmatpush1.bf16.msra.mxu0 %v2026
        %2043 = vmatprep.subr.bf16.mxu0 0
        %2044 = vmatpush1.bf16.msra.mxu0 0
        %2045 = vmatprep.subr.bf16.mxu0 0
        %2046 = vmatpush1.bf16.msra.mxu0 0
        %2047 = vmatprep.subr.bf16.mxu0 0
        %2048 = vmatpush1.bf16.msra.mxu0 0
        %2049 = vmatprep.subr.bf16.mxu0 0
        %2050 = vmatpush1.bf16.msra.mxu0 0
        %2051 = vmatprep.subr.bf16.mxu0 0
        %2052 = vmatpush1.bf16.msra.mxu0 0
        %2053 = vmatprep.subr.bf16.mxu0 0
        %2054 = vmatpush1.bf16.msra.mxu0 0
        %2055 = vmatprep.subr.bf16.mxu0 0
        %2056 = vmatpush1.bf16.msra.mxu0 0
        %2057 = vmatprep.subr.bf16.mxu0 0
        %2058 = vmatpush1.bf16.msra.mxu0 0
        %2059 = vmatprep.subr.bf16.mxu0 0
        %2060 = vmatpush1.bf16.msra.mxu0 0
        %2061 = vmatprep.subr.bf16.mxu0 0
        %2062 = vmatpush1.bf16.msra.mxu0 0
        %2063 = vmatprep.subr.bf16.mxu0 0
        %2064 = vmatpush1.bf16.msra.mxu0 0
        %2065 = vmatprep.subr.bf16.mxu0 0
        %2066 = vmatpush1.bf16.msra.mxu0 0
        %2067 = vmatprep.mubr.bf16.mxu0 0
        %2068 = vmatmul.mubr.bf16.gmra.mrb[0].mxu0 %v2033
        %v2069 = vpop.f32.mrb[0].mxu0
        %v2070 = vadd.f32 %v2005, %v2069
        %v2071 = vpop.f32.mrb[0].mxu0
        %v2072 = vpop.f32.mrb[0].mxu0
        %v2073 = vadd.f32 %v2005, %v2072
        %v2074 = vpop.f32.mrb[0].mxu0
        %2075 = vdwg.mxu0
        %v2076 = vadd.f32 %v1859, %v2070
        %v2077 = vadd.f32 %v1860, %v2073
        %2078 = vst.msk [vmem:[%s433] sm:$0xff] %vm444, %v2076
        %2079 = vst.msk [vmem:[%s433 + $0x8] sm:$0xff] %vm444, %v2077
        %s2080 = sand.u32 %s313, 1
        %s2081 = scalar_lea.sflag [#allocation4], %s2080
        %s2082 = sand.u32 %s313, 1
        %s2083 = smul.addr %s2082, 16
        %s2084 = scalar_lea.vmem [#allocation3], %s2083
        // Predicated region
        $region73: #{tpu_custom_call.1} parent=71 // pred_check
          %p2085 = pneg %p323
        $region74: #{tpu_custom_call.1} parent=71 // pred_check_branch
          %2087 = sbr.rel (%p2085) target = $region76
        $region75: #{tpu_custom_call.1} parent=71 // pred_region
          %s2089 = ssub.s32 256, 256
          %2090 = vsyncadd %s2081, %s2089
          %s2091 = smul.addr %s27, 2
          %s2092 = smul.addr %s2091, 128
          %s2093 = scalar_lea.hbm %s13, %s2092
          %s2094 = sshll.u32 %s2084, 4
          %s2095 = int_to_ptr.vmem [resolvable:$true] %s2094
          %2100 = dma.vmem_to_hbm [thread:$0]  %s2095, 256, %s2093, %s2081, 128, 128, 8
        $region76: #{tpu_custom_call.1} parent=71 // pred_fallthru
          _
      $region72: #{tpu_custom_call.1} parent=5 // pred_fallthru
        _
      %p2101 = scmp.le.s32.totalorder 2, %s22
      // Predicated region
      $region77: #{tpu_custom_call.1} parent=5 // pred_check
        %p2102 = pneg %p2101
      $region78: #{tpu_custom_call.1} parent=5 // pred_check_branch
        %2104 = sbr.rel (%p2102) target = $region80
      $region79: #{tpu_custom_call.1} parent=5 // pred_region
        %s2105 = ssub.s32 %s22, 2
        // Predicated region
        $region81: #{tpu_custom_call.1} parent=79 // pred_check
          %p2106 = pneg %p329
        $region82: #{tpu_custom_call.1} parent=79 // pred_check_branch
          %2108 = sbr.rel (%p2106) target = $region84
        $region83: #{tpu_custom_call.1} parent=79 // pred_region
          %s2109 = sand.u32 %s314, 1
          %s2110 = scalar_lea.sflag [#allocation4], %s2109
          %s2111 = sand.u32 %s314, 1
          %s2112 = smul.addr %s2111, 16
          %s2113 = scalar_lea.vmem [#allocation3], %s2112
          %2114 = dma.done %s2110, 256
        $region84: #{tpu_custom_call.1} parent=79 // pred_fallthru
          _
      $region80: #{tpu_custom_call.1} parent=5 // pred_fallthru
        _
    $region6: #{tpu_custom_call.1} parent=1 // loop_footer
      %s26 = sadd.s32 1, %s22
    $region7: #{tpu_custom_call.1} parent=1 // loop_footer_branch
      %21 = sbr.rel target = $region3
    $region8: #{tpu_custom_call.1} parent=1 // loop_exit
      _
    %2115 = vsyncpa [#allocation4], 1
    %s2116 = scalar_lea.sflag [#allocation4], 1
    %2117 = vsyncpa %s2116, 1

</llo_original>
